<compile_context>
chip_gen: v7x
topology: tpu7x:2x2x1
jax: 0.10.0
libtpu: 0.0.40
codegen_flags: <defaults>
</compile_context>

<pallas_src>
import functools

import jax
import jax.numpy as jnp
from jax.experimental import pallas as pl
from jax.experimental.pallas import tpu as pltpu


# ----------------------------------------------------------------------------
# tiling helpers
# ----------------------------------------------------------------------------
def _pick_row_tile(n, cap=512):
    """Largest divisor of n that is <= cap and (== n or a multiple of 8)."""
    for d in range(min(n, cap), 0, -1):
        if n % d == 0 and (d == n or d % 8 == 0):
            return d
    return n


def _pick_time_tile(t, cap=32):
    """Largest divisor of t that is <= cap (leading dim: no 8/128 constraint)."""
    for d in range(min(t, cap), 0, -1):
        if t % d == 0:
            return d
    return 1


# ----------------------------------------------------------------------------
# Pallas kernels
# ----------------------------------------------------------------------------
def _gate_proj_kernel(x_ref, w_ref, b_ref, o_ref):
    """Hoisted input projection: (RT, Din) @ (Din, 4H) + bias -> (RT, 4H) f32."""
    o_ref[...] = (
        jnp.dot(x_ref[...].astype(jnp.bfloat16), w_ref[...],
                preferred_element_type=jnp.float32)
        + b_ref[...]
    ).astype(o_ref.dtype)


def _cell_step(gx_t, h, c, whh):
    """One LSTM cell update. gx_t = x_t@W_ih + b (f32); whh is bf16."""
    hidden = h.shape[-1]
    gates = gx_t + jnp.dot(h.astype(jnp.bfloat16), whh,
                           preferred_element_type=jnp.float32)
    # PyTorch gate order: i, f, g, o  (kept in f32 on the VPU/EUP)
    i_g = jax.nn.sigmoid(gates[:, 0 * hidden:1 * hidden])
    f_g = jax.nn.sigmoid(gates[:, 1 * hidden:2 * hidden])
    g_g = jnp.tanh(gates[:, 2 * hidden:3 * hidden])
    o_g = jax.nn.sigmoid(gates[:, 3 * hidden:4 * hidden])
    c_new = f_g * c + i_g * g_g
    h_new = o_g * jnp.tanh(c_new)
    return h_new, c_new


def _lstm_seq_kernel(gx_ref, whh_ref, out_ref, h_sc, c_sc):
    """Recurrence of a non-final layer over a block of TT timesteps.

    gx_ref : (TT, B, 4H) f32  precomputed x@W_ih + b for this time block
    whh_ref: (H, 4H)     bf16 recurrent weights (VMEM resident)
    out_ref: (TT, B, H)  f32  hidden-state sequence (input of the next layer)
    h_sc/c_sc: (B, H) f32 scratch carrying the recurrence across grid steps
    """
    tb = pl.program_id(0)

    @pl.when(tb == 0)
    def _():
        # h0 / c0 are zeros, matching torch.zeros(...) in the module forward.
        h_sc[...] = jnp.zeros_like(h_sc)
        c_sc[...] = jnp.zeros_like(c_sc)

    whh = whh_ref[...]
    tt_block = gx_ref.shape[0]

    def step(i, carry):
        h, c = carry
        h_new, c_new = _cell_step(gx_ref[i], h, c, whh)
        out_ref[i] = h_new.astype(out_ref.dtype)
        return h_new, c_new

    h, c = jax.lax.fori_loop(0, tt_block, step, (h_sc[...], c_sc[...]),
                             unroll=True)
    h_sc[...] = h
    c_sc[...] = c


def _lstm_final_kernel(gx_ref, whh_ref, fcw_ref, fcb_ref, out_ref, h_sc, c_sc):
    """Final-layer recurrence fused with the Linear head.

    Only out[:, -1, :] feeds fc, so no hidden sequence is written back to HBM;
    the (B, C) logits are produced on the last grid step and stay VMEM resident
    (constant output block index) until the single final writeback.
    """
    tb = pl.program_id(0)

    @pl.when(tb == 0)
    def _():
        h_sc[...] = jnp.zeros_like(h_sc)
        c_sc[...] = jnp.zeros_like(c_sc)

    whh = whh_ref[...]
    tt_block = gx_ref.shape[0]

    def step(i, carry):
        h, c = carry
        return _cell_step(gx_ref[i], h, c, whh)

    h, c = jax.lax.fori_loop(0, tt_block, step, (h_sc[...], c_sc[...]),
                             unroll=True)
    h_sc[...] = h
    c_sc[...] = c

    @pl.when(tb == pl.num_programs(0) - 1)
    def _():
        out_ref[...] = (
            jnp.dot(h, fcw_ref[...], preferred_element_type=jnp.float32)
            + fcb_ref[...]
        ).astype(out_ref.dtype)


# ----------------------------------------------------------------------------
# pallas_call wrappers
# ----------------------------------------------------------------------------
def gate_projection_pallas(x2d, wih_bf16, bias):
    """(N, Din) @ (Din, 4H) + b -> (N, 4H) f32, tiled over rows."""
    n, d_in = x2d.shape
    g = wih_bf16.shape[1]
    rt = _pick_row_tile(n)
    return pl.pallas_call(
        _gate_proj_kernel,
        out_shape=jax.ShapeDtypeStruct((n, g), jnp.float32),
        grid_spec=pltpu.PrefetchScalarGridSpec(
            num_scalar_prefetch=0,
            grid=(n // rt,),
            in_specs=[
                pl.BlockSpec((rt, d_in), lambda i: (i, 0)),
                pl.BlockSpec((d_in, g), lambda i: (0, 0)),
                pl.BlockSpec((1, g), lambda i: (0, 0)),
            ],
            out_specs=pl.BlockSpec((rt, g), lambda i: (i, 0)),
        ),
        compiler_params=pltpu.CompilerParams(
            dimension_semantics=("parallel",)),
    )(x2d, wih_bf16, bias)


def lstm_recurrence_seq_pallas(gx_tbg, whh_bf16, hidden):
    """Run the recurrence of one non-final layer. gx_tbg: (T, B, 4H) -> (T, B, H)."""
    t, b, g = gx_tbg.shape
    tt = _pick_time_tile(t)
    return pl.pallas_call(
        _lstm_seq_kernel,
        out_shape=jax.ShapeDtypeStruct((t, b, hidden), jnp.float32),
        grid_spec=pltpu.PrefetchScalarGridSpec(
            num_scalar_prefetch=0,
            grid=(t // tt,),
            in_specs=[
                pl.BlockSpec((tt, b, g), lambda i: (i, 0, 0)),
                # NOTE: constant-index weight block; for large H (v7x 64 MiB VMEM)
                # consider pipeline_mode=pl.Buffered(1) + an explicit vmem limit.
                pl.BlockSpec((hidden, g), lambda i: (0, 0)),
            ],
            out_specs=pl.BlockSpec((tt, b, hidden), lambda i: (i, 0, 0)),
            scratch_shapes=[
                pltpu.VMEM((b, hidden), jnp.float32),
                pltpu.VMEM((b, hidden), jnp.float32),
            ],
        ),
        compiler_params=pltpu.CompilerParams(
            dimension_semantics=("arbitrary",)),  # recurrence: sequential in time
    )(gx_tbg, whh_bf16)


def lstm_recurrence_final_pallas(gx_tbg, whh_bf16, fc_w_t, fc_b, hidden):
    """Final layer recurrence + fused FC. Returns (B, num_classes) logits."""
    t, b, g = gx_tbg.shape
    n_cls = fc_w_t.shape[1]
    tt = _pick_time_tile(t)
    return pl.pallas_call(
        _lstm_final_kernel,
        out_shape=jax.ShapeDtypeStruct((b, n_cls), jnp.float32),
        grid_spec=pltpu.PrefetchScalarGridSpec(
            num_scalar_prefetch=0,
            grid=(t // tt,),
            in_specs=[
                pl.BlockSpec((tt, b, g), lambda i: (i, 0, 0)),
                pl.BlockSpec((hidden, g), lambda i: (0, 0)),
                pl.BlockSpec((hidden, n_cls), lambda i: (0, 0)),
                pl.BlockSpec((1, n_cls), lambda i: (0, 0)),
            ],
            # Logits block index is constant: stays VMEM resident, one writeback.
            out_specs=pl.BlockSpec((b, n_cls), lambda i: (0, 0)),
            scratch_shapes=[
                pltpu.VMEM((b, hidden), jnp.float32),
                pltpu.VMEM((b, hidden), jnp.float32),
            ],
        ),
        compiler_params=pltpu.CompilerParams(
            dimension_semantics=("arbitrary",)),
    )(gx_tbg, whh_bf16, fc_w_t, fc_b)


@functools.partial(jax.jit, static_argnames=("num_layers",))
def lstm_norm_forward(x_btd, params, num_layers):
    """Equivalent of LSTM_norm.forward (inference / eval mode).

    x_btd: (B, T, input_size), batch_first like the PyTorch module.
    """
    b, t, _ = x_btd.shape
    hidden = params["lstm"][0][1].shape[0]
    # One transpose of the *smallest* tensor in the pipeline to time-major; an
    # in-kernel fold would need a cross-sublane transpose, so this stays in XLA.
    h_tm = jnp.transpose(x_btd, (1, 0, 2)).astype(jnp.float32)  # (T, B, D)
    logits = None
    for layer in range(num_layers):
        wih_t, whh_t, bias = params["lstm"][layer]
        wih_bf = wih_t.astype(jnp.bfloat16)   # bf16 matmul operands (MXU native)
        whh_bf = whh_t.astype(jnp.bfloat16)
        d_in = h_tm.shape[-1]
        # Hoisted non-recurrent projection: one (T*B, Din) x (Din, 4H) matmul.
        gx = gate_projection_pallas(h_tm.reshape(t * b, d_in), wih_bf, bias)
        gx = gx.reshape(t, b, 4 * hidden)  # free row-major metadata reshape
        if layer < num_layers - 1:
            h_tm = lstm_recurrence_seq_pallas(gx, whh_bf, hidden)
        else:
            # TODO(synk): nn.Dropout is identity in eval mode; training-mode
            # dropout mask is not applied.
            logits = lstm_recurrence_final_pallas(
                gx, whh_bf, params["fc_w_t"], params["fc_b"], hidden)
    return logits


# ----------------------------------------------------------------------------
# Deterministic parameter init (PyTorch-style uniform bounds)
# ----------------------------------------------------------------------------
def init_params(key, input_size, hidden_size, num_layers, num_classes):
    params = {"lstm": []}
    k = 1.0 / jnp.sqrt(hidden_size)
    for layer in range(num_layers):
        in_sz = input_size if layer == 0 else hidden_size
        key, k1, k2, k3, k4 = jax.random.split(key, 5)
        w_ih = jax.random.uniform(k1, (4 * hidden_size, in_sz), jnp.float32, -k, k)
        w_hh = jax.random.uniform(k2, (4 * hidden_size, hidden_size), jnp.float32, -k, k)
        b_ih = jax.random.uniform(k3, (4 * hidden_size,), jnp.float32, -k, k)
        b_hh = jax.random.uniform(k4, (4 * hidden_size,), jnp.float32, -k, k)
        params["lstm"].append(
            (w_ih.T, w_hh.T, (b_ih + b_hh).reshape(1, 4 * hidden_size))
        )
    key, k5, k6 = jax.random.split(key, 3)
    fc_w = jax.random.uniform(k5, (num_classes, hidden_size), jnp.float32, -k, k)
    fc_b = jax.random.uniform(k6, (num_classes,), jnp.float32, -k, k)
    params["fc_w_t"] = fc_w.T
    params["fc_b"] = fc_b.reshape(1, num_classes)
    return params


# ----------------------------------------------------------------------------
# Pure-JAX f32 reference (for correctness check)
# ----------------------------------------------------------------------------
def lstm_norm_reference(x_btd, params, num_layers):
    batch = x_btd.shape[0]
    hidden = params["lstm"][0][1].shape[0]
    h_seq = x_btd
    for layer in range(num_layers):
        wih_t, whh_t, bias = params["lstm"][layer]

        def step(carry, x_t):
            h, c = carry
            gates = x_t @ wih_t + h @ whh_t + bias
            i = jax.nn.sigmoid(gates[:, 0 * hidden:1 * hidden])
            f = jax.nn.sigmoid(gates[:, 1 * hidden:2 * hidden])
            g = jnp.tanh(gates[:, 2 * hidden:3 * hidden])
            o = jax.nn.sigmoid(gates[:, 3 * hidden:4 * hidden])
            c = f * c + i * g
            h = o * jnp.tanh(c)
            return (h, c), h

        init = (jnp.zeros((batch, hidden), jnp.float32),
                jnp.zeros((batch, hidden), jnp.float32))
        _, hs = jax.lax.scan(step, init, jnp.transpose(h_seq, (1, 0, 2)))
        h_seq = jnp.transpose(hs, (1, 0, 2))
    last = h_seq[:, -1, :]
    return last @ params["fc_w_t"] + params["fc_b"]


if __name__ == "__main__":
    B, T = 2, 8
    input_size, hidden_size, num_layers, num_classes = 16, 32, 2, 4

    key = jax.random.PRNGKey(0)
    key, kx, kp = jax.random.split(key, 3)
    x = jax.random.normal(kx, (B, T, input_size), jnp.float32)
    params = init_params(kp, input_size, hidden_size, num_layers, num_classes)

    out = lstm_norm_forward(x, params, num_layers)
    out = jax.block_until_ready(out)

    ref = lstm_norm_reference(x, params, num_layers)
    assert out.shape == (B, num_classes), out.shape
    # bf16 matmul operands (f32 accumulation / f32 cell state) => looser tolerance
    # than a pure-f32 comparison.
    assert jnp.allclose(out, ref, atol=2e-2, rtol=2e-2), (out, ref)

    print("KERNEL_OK")
</pallas_src>

<mosaic_0001>
module attributes {stable_mosaic.version = 11 : i64} {
  func.func @_gate_proj_kernel(%arg0: i32, %arg1: memref<16x16xf32, #tpu.memory_space<vmem>>, %arg2: memref<16x128xbf16, #tpu.memory_space<vmem>>, %arg3: memref<1x128xf32, #tpu.memory_space<vmem>>, %arg4: memref<16x128xf32, #tpu.memory_space<vmem>>) attributes {dimension_semantics = [#tpu.dimension_semantics<parallel>], iteration_bounds = array<i64: 1>, scalar_prefetch = 0 : i64, scratch_operands = 0 : i64, tpu.core_type = #tpu.core_type<tc>, window_params = [{transform_indices = @transform_0, window_bounds = array<i64: 16, 16>}, {pipeline_mode = #tpu.pipeline_mode<synchronous>, transform_indices = @transform_1, window_bounds = array<i64: 16, 128>}, {pipeline_mode = #tpu.pipeline_mode<synchronous>, transform_indices = @transform_2, window_bounds = array<i64: 1, 128>}, {transform_indices = @transform_3, window_bounds = array<i64: 16, 128>}]} {
    %c0 = arith.constant 0 : index
    %c0_0 = arith.constant 0 : index
    %0 = vector.load %arg1[%c0, %c0_0] : memref<16x16xf32, #tpu.memory_space<vmem>>, vector<16x16xf32>
    %1 = arith.truncf %0 : vector<16x16xf32> to vector<16x16xbf16>
    %c0_1 = arith.constant 0 : index
    %c0_2 = arith.constant 0 : index
    %2 = vector.load %arg2[%c0_1, %c0_2] : memref<16x128xbf16, #tpu.memory_space<vmem>>, vector<16x128xbf16>
    %cst = arith.constant dense<0.000000e+00> : vector<16x128xf32>
    %3 = tpu.matmul %1, %2, %cst {dimension_numbers = #tpu.dot_dimension_numbers<[1], [0], [0], [1], [0, 0, 1, 1], [], []>} : vector<16x16xbf16>, vector<16x128xbf16>, vector<16x128xf32> -> vector<16x128xf32>
    %c0_3 = arith.constant 0 : index
    %c0_4 = arith.constant 0 : index
    %4 = vector.load %arg3[%c0_3, %c0_4] : memref<1x128xf32, #tpu.memory_space<vmem>>, vector<1x128xf32>
    %5 = vector.broadcast %4 : vector<1x128xf32> to vector<16x128xf32>
    %6 = arith.addf %3, %5 : vector<16x128xf32>
    %c0_5 = arith.constant 0 : index
    %c0_6 = arith.constant 0 : index
    %7 = vector.load %arg4[%c0_5, %c0_6] : memref<16x128xf32, #tpu.memory_space<vmem>>, vector<16x128xf32>
    tpu.vector_store %arg4[%c0_5, %c0_6], %6 {strides = array<i32>} : memref<16x128xf32, #tpu.memory_space<vmem>>, vector<16x128xf32>,
    return
  }
  func.func @transform_0(%arg0: i32) -> (i32, i32) {
    %c0_i32 = arith.constant 0 : i32
    %c0_i32_0 = arith.constant 0 : i32
    return %arg0, %c0_i32 : i32, i32
  }
  func.func @transform_1(%arg0: i32) -> (i32, i32) {
    %c0_i32 = arith.constant 0 : i32
    %c0_i32_0 = arith.constant 0 : i32
    %c0_i32_1 = arith.constant 0 : i32
    return %c0_i32, %c0_i32_0 : i32, i32
  }
  func.func @transform_2(%arg0: i32) -> (i32, i32) {
    %c0_i32 = arith.constant 0 : i32
    %c0_i32_0 = arith.constant 0 : i32
    %c0_i32_1 = arith.constant 0 : i32
    return %c0_i32, %c0_i32_0 : i32, i32
  }
  func.func @transform_3(%arg0: i32) -> (i32, i32) {
    %c0_i32 = arith.constant 0 : i32
    %c0_i32_0 = arith.constant 0 : i32
    return %arg0, %c0_i32 : i32, i32
  }
}

module attributes {stable_mosaic.version = 11 : i64} {
  func.func @_gate_proj_kernel(%arg0: i32, %arg1: memref<16x32xf32, #tpu.memory_space<vmem>>, %arg2: memref<32x128xbf16, #tpu.memory_space<vmem>>, %arg3: memref<1x128xf32, #tpu.memory_space<vmem>>, %arg4: memref<16x128xf32, #tpu.memory_space<vmem>>) attributes {dimension_semantics = [#tpu.dimension_semantics<parallel>], iteration_bounds = array<i64: 1>, scalar_prefetch = 0 : i64, scratch_operands = 0 : i64, tpu.core_type = #tpu.core_type<tc>, window_params = [{transform_indices = @transform_0, window_bounds = array<i64: 16, 32>}, {pipeline_mode = #tpu.pipeline_mode<synchronous>, transform_indices = @transform_1, window_bounds = array<i64: 32, 128>}, {pipeline_mode = #tpu.pipeline_mode<synchronous>, transform_indices = @transform_2, window_bounds = array<i64: 1, 128>}, {transform_indices = @transform_3, window_bounds = array<i64: 16, 128>}]} {
    %c0 = arith.constant 0 : index
    %c0_0 = arith.constant 0 : index
    %0 = vector.load %arg1[%c0, %c0_0] : memref<16x32xf32, #tpu.memory_space<vmem>>, vector<16x32xf32>
    %1 = arith.truncf %0 : vector<16x32xf32> to vector<16x32xbf16>
    %c0_1 = arith.constant 0 : index
    %c0_2 = arith.constant 0 : index
    %2 = vector.load %arg2[%c0_1, %c0_2] : memref<32x128xbf16, #tpu.memory_space<vmem>>, vector<32x128xbf16>
    %cst = arith.constant dense<0.000000e+00> : vector<16x128xf32>
    %3 = tpu.matmul %1, %2, %cst {dimension_numbers = #tpu.dot_dimension_numbers<[1], [0], [0], [1], [0, 0, 1, 1], [], []>} : vector<16x32xbf16>, vector<32x128xbf16>, vector<16x128xf32> -> vector<16x128xf32>
    %c0_3 = arith.constant 0 : index
    %c0_4 = arith.constant 0 : index
    %4 = vector.load %arg3[%c0_3, %c0_4] : memref<1x128xf32, #tpu.memory_space<vmem>>, vector<1x128xf32>
    %5 = vector.broadcast %4 : vector<1x128xf32> to vector<16x128xf32>
    %6 = arith.addf %3, %5 : vector<16x128xf32>
    %c0_5 = arith.constant 0 : index
    %c0_6 = arith.constant 0 : index
    %7 = vector.load %arg4[%c0_5, %c0_6] : memref<16x128xf32, #tpu.memory_space<vmem>>, vector<16x128xf32>
    tpu.vector_store %arg4[%c0_5, %c0_6], %6 {strides = array<i32>} : memref<16x128xf32, #tpu.memory_space<vmem>>, vector<16x128xf32>,
    return
  }
  func.func @transform_0(%arg0: i32) -> (i32, i32) {
    %c0_i32 = arith.constant 0 : i32
    %c0_i32_0 = arith.constant 0 : i32
    return %arg0, %c0_i32 : i32, i32
  }
  func.func @transform_1(%arg0: i32) -> (i32, i32) {
    %c0_i32 = arith.constant 0 : i32
    %c0_i32_0 = arith.constant 0 : i32
    %c0_i32_1 = arith.constant 0 : i32
    return %c0_i32, %c0_i32_0 : i32, i32
  }
  func.func @transform_2(%arg0: i32) -> (i32, i32) {
    %c0_i32 = arith.constant 0 : i32
    %c0_i32_0 = arith.constant 0 : i32
    %c0_i32_1 = arith.constant 0 : i32
    return %c0_i32, %c0_i32_0 : i32, i32
  }
  func.func @transform_3(%arg0: i32) -> (i32, i32) {
    %c0_i32 = arith.constant 0 : i32
    %c0_i32_0 = arith.constant 0 : i32
    return %arg0, %c0_i32 : i32, i32
  }
}

module attributes {stable_mosaic.version = 11 : i64} {
  func.func @_lstm_seq_kernel(%arg0: i32, %arg1: memref<8x2x128xf32, #tpu.memory_space<vmem>>, %arg2: memref<32x128xbf16, #tpu.memory_space<vmem>>, %arg3: memref<8x2x32xf32, #tpu.memory_space<vmem>>, %arg4: memref<2x32xf32, #tpu.memory_space<vmem>>, %arg5: memref<2x32xf32, #tpu.memory_space<vmem>>) attributes {dimension_semantics = [#tpu.dimension_semantics<arbitrary>], iteration_bounds = array<i64: 1>, scalar_prefetch = 0 : i64, scratch_operands = 2 : i64, tpu.core_type = #tpu.core_type<tc>, window_params = [{transform_indices = @transform_0, window_bounds = array<i64: 8, 2, 128>}, {pipeline_mode = #tpu.pipeline_mode<synchronous>, transform_indices = @transform_1, window_bounds = array<i64: 32, 128>}, {transform_indices = @transform_2, window_bounds = array<i64: 8, 2, 32>}]} {
    %c0_i32 = arith.constant 0 : i32
    %0 = arith.cmpi eq, %arg0, %c0_i32 : i32
    %1 = arith.extui %0 : i1 to i32
    %c0_i32_0 = arith.constant 0 : i32
    %2 = arith.cmpi ne, %1, %c0_i32_0 : i32
    scf.if %2 {
      %cst_74 = arith.constant 0.000000e+00 : f32
      %288 = vector.broadcast %cst_74 : f32 to vector<2x32xf32>
      %c0_75 = arith.constant 0 : index
      %c0_76 = arith.constant 0 : index
      %289 = vector.load %arg4[%c0_75, %c0_76] : memref<2x32xf32, #tpu.memory_space<vmem>>, vector<2x32xf32>
      tpu.vector_store %arg4[%c0_75, %c0_76], %288 {strides = array<i32>} : memref<2x32xf32, #tpu.memory_space<vmem>>, vector<2x32xf32>,
      %cst_77 = arith.constant 0.000000e+00 : f32
      %290 = vector.broadcast %cst_77 : f32 to vector<2x32xf32>
      %c0_78 = arith.constant 0 : index
      %c0_79 = arith.constant 0 : index
      %291 = vector.load %arg5[%c0_78, %c0_79] : memref<2x32xf32, #tpu.memory_space<vmem>>, vector<2x32xf32>
      tpu.vector_store %arg5[%c0_78, %c0_79], %290 {strides = array<i32>} : memref<2x32xf32, #tpu.memory_space<vmem>>, vector<2x32xf32>,
    } else {
    }
    %c0 = arith.constant 0 : index
    %c0_1 = arith.constant 0 : index
    %3 = vector.load %arg2[%c0, %c0_1] : memref<32x128xbf16, #tpu.memory_space<vmem>>, vector<32x128xbf16>
    %c0_2 = arith.constant 0 : index
    %c0_3 = arith.constant 0 : index
    %4 = vector.load %arg4[%c0_2, %c0_3] : memref<2x32xf32, #tpu.memory_space<vmem>>, vector<2x32xf32>
    %c0_4 = arith.constant 0 : index
    %c0_5 = arith.constant 0 : index
    %5 = vector.load %arg5[%c0_4, %c0_5] : memref<2x32xf32, #tpu.memory_space<vmem>>, vector<2x32xf32>
    %c0_i32_6 = arith.constant 0 : i32
    %6 = arith.index_cast %c0_i32_6 : i32 to index
    %c0_7 = arith.constant 0 : index
    %c0_8 = arith.constant 0 : index
    %7 = vector.load %arg1[%6, %c0_7, %c0_8] : memref<8x2x128xf32, #tpu.memory_space<vmem>>, vector<1x2x128xf32>
    %8 = vector.shape_cast %7 : vector<1x2x128xf32> to vector<2x128xf32>
    %9 = arith.truncf %4 : vector<2x32xf32> to vector<2x32xbf16>
    %cst = arith.constant dense<0.000000e+00> : vector<2x128xf32>
    %10 = tpu.matmul %9, %3, %cst {dimension_numbers = #tpu.dot_dimension_numbers<[1], [0], [0], [1], [0, 0, 1, 1], [], []>} : vector<2x32xbf16>, vector<32x128xbf16>, vector<2x128xf32> -> vector<2x128xf32>
    %11 = arith.addf %8, %10 : vector<2x128xf32>
    %12 = vector.extract_strided_slice %11 {offsets = [0, 0], sizes = [2, 32], strides = [1, 1]} : vector<2x128xf32> to vector<2x32xf32>
    %13 = arith.negf %12 : vector<2x32xf32>
    %14 = math.exp %13 : vector<2x32xf32>
    %cst_9 = arith.constant 1.000000e+00 : f32
    %15 = vector.broadcast %cst_9 : f32 to vector<2x32xf32>
    %16 = arith.addf %15, %14 : vector<2x32xf32>
    %17 = arith.divf %15, %16 : vector<2x32xf32>
    %18 = vector.extract_strided_slice %11 {offsets = [0, 32], sizes = [2, 32], strides = [1, 1]} : vector<2x128xf32> to vector<2x32xf32>
    %19 = arith.negf %18 : vector<2x32xf32>
    %20 = math.exp %19 : vector<2x32xf32>
    %cst_10 = arith.constant 1.000000e+00 : f32
    %21 = vector.broadcast %cst_10 : f32 to vector<2x32xf32>
    %22 = arith.addf %21, %20 : vector<2x32xf32>
    %23 = arith.divf %21, %22 : vector<2x32xf32>
    %24 = vector.extract_strided_slice %11 {offsets = [0, 64], sizes = [2, 32], strides = [1, 1]} : vector<2x128xf32> to vector<2x32xf32>
    %25 = math.tanh %24 : vector<2x32xf32>
    %26 = vector.extract_strided_slice %11 {offsets = [0, 96], sizes = [2, 32], strides = [1, 1]} : vector<2x128xf32> to vector<2x32xf32>
    %27 = arith.negf %26 : vector<2x32xf32>
    %28 = math.exp %27 : vector<2x32xf32>
    %cst_11 = arith.constant 1.000000e+00 : f32
    %29 = vector.broadcast %cst_11 : f32 to vector<2x32xf32>
    %30 = arith.addf %29, %28 : vector<2x32xf32>
    %31 = arith.divf %29, %30 : vector<2x32xf32>
    %32 = arith.mulf %23, %5 : vector<2x32xf32>
    %33 = arith.mulf %17, %25 : vector<2x32xf32>
    %34 = arith.addf %32, %33 : vector<2x32xf32>
    %35 = math.tanh %34 : vector<2x32xf32>
    %36 = arith.mulf %31, %35 : vector<2x32xf32>
    %37 = arith.index_cast %c0_i32_6 : i32 to index
    %c0_12 = arith.constant 0 : index
    %c0_13 = arith.constant 0 : index
    %38 = vector.load %arg3[%37, %c0_12, %c0_13] : memref<8x2x32xf32, #tpu.memory_space<vmem>>, vector<1x2x32xf32>
    %39 = vector.shape_cast %38 : vector<1x2x32xf32> to vector<2x32xf32>
    %40 = vector.shape_cast %36 : vector<2x32xf32> to vector<1x2x32xf32>
    tpu.vector_store %arg3[%37, %c0_12, %c0_13], %40 {strides = array<i32>} : memref<8x2x32xf32, #tpu.memory_space<vmem>>, vector<1x2x32xf32>,
    %c1_i32 = arith.constant 1 : i32
    %41 = arith.index_cast %c1_i32 : i32 to index
    %c0_14 = arith.constant 0 : index
    %c0_15 = arith.constant 0 : index
    %42 = vector.load %arg1[%41, %c0_14, %c0_15] : memref<8x2x128xf32, #tpu.memory_space<vmem>>, vector<1x2x128xf32>
    %43 = vector.shape_cast %42 : vector<1x2x128xf32> to vector<2x128xf32>
    %44 = arith.truncf %36 : vector<2x32xf32> to vector<2x32xbf16>
    %cst_16 = arith.constant dense<0.000000e+00> : vector<2x128xf32>
    %45 = tpu.matmul %44, %3, %cst_16 {dimension_numbers = #tpu.dot_dimension_numbers<[1], [0], [0], [1], [0, 0, 1, 1], [], []>} : vector<2x32xbf16>, vector<32x128xbf16>, vector<2x128xf32> -> vector<2x128xf32>
    %46 = arith.addf %43, %45 : vector<2x128xf32>
    %47 = vector.extract_strided_slice %46 {offsets = [0, 0], sizes = [2, 32], strides = [1, 1]} : vector<2x128xf32> to vector<2x32xf32>
    %48 = arith.negf %47 : vector<2x32xf32>
    %49 = math.exp %48 : vector<2x32xf32>
    %cst_17 = arith.constant 1.000000e+00 : f32
    %50 = vector.broadcast %cst_17 : f32 to vector<2x32xf32>
    %51 = arith.addf %50, %49 : vector<2x32xf32>
    %52 = arith.divf %50, %51 : vector<2x32xf32>
    %53 = vector.extract_strided_slice %46 {offsets = [0, 32], sizes = [2, 32], strides = [1, 1]} : vector<2x128xf32> to vector<2x32xf32>
    %54 = arith.negf %53 : vector<2x32xf32>
    %55 = math.exp %54 : vector<2x32xf32>
    %cst_18 = arith.constant 1.000000e+00 : f32
    %56 = vector.broadcast %cst_18 : f32 to vector<2x32xf32>
    %57 = arith.addf %56, %55 : vector<2x32xf32>
    %58 = arith.divf %56, %57 : vector<2x32xf32>
    %59 = vector.extract_strided_slice %46 {offsets = [0, 64], sizes = [2, 32], strides = [1, 1]} : vector<2x128xf32> to vector<2x32xf32>
    %60 = math.tanh %59 : vector<2x32xf32>
    %61 = vector.extract_strided_slice %46 {offsets = [0, 96], sizes = [2, 32], strides = [1, 1]} : vector<2x128xf32> to vector<2x32xf32>
    %62 = arith.negf %61 : vector<2x32xf32>
    %63 = math.exp %62 : vector<2x32xf32>
    %cst_19 = arith.constant 1.000000e+00 : f32
    %64 = vector.broadcast %cst_19 : f32 to vector<2x32xf32>
    %65 = arith.addf %64, %63 : vector<2x32xf32>
    %66 = arith.divf %64, %65 : vector<2x32xf32>
    %67 = arith.mulf %58, %34 : vector<2x32xf32>
    %68 = arith.mulf %52, %60 : vector<2x32xf32>
    %69 = arith.addf %67, %68 : vector<2x32xf32>
    %70 = math.tanh %69 : vector<2x32xf32>
    %71 = arith.mulf %66, %70 : vector<2x32xf32>
    %72 = arith.index_cast %c1_i32 : i32 to index
    %c0_20 = arith.constant 0 : index
    %c0_21 = arith.constant 0 : index
    %73 = vector.load %arg3[%72, %c0_20, %c0_21] : memref<8x2x32xf32, #tpu.memory_space<vmem>>, vector<1x2x32xf32>
    %74 = vector.shape_cast %73 : vector<1x2x32xf32> to vector<2x32xf32>
    %75 = vector.shape_cast %71 : vector<2x32xf32> to vector<1x2x32xf32>
    tpu.vector_store %arg3[%72, %c0_20, %c0_21], %75 {strides = array<i32>} : memref<8x2x32xf32, #tpu.memory_space<vmem>>, vector<1x2x32xf32>,
    %c2_i32 = arith.constant 2 : i32
    %76 = arith.index_cast %c2_i32 : i32 to index
    %c0_22 = arith.constant 0 : index
    %c0_23 = arith.constant 0 : index
    %77 = vector.load %arg1[%76, %c0_22, %c0_23] : memref<8x2x128xf32, #tpu.memory_space<vmem>>, vector<1x2x128xf32>
    %78 = vector.shape_cast %77 : vector<1x2x128xf32> to vector<2x128xf32>
    %79 = arith.truncf %71 : vector<2x32xf32> to vector<2x32xbf16>
    %cst_24 = arith.constant dense<0.000000e+00> : vector<2x128xf32>
    %80 = tpu.matmul %79, %3, %cst_24 {dimension_numbers = #tpu.dot_dimension_numbers<[1], [0], [0], [1], [0, 0, 1, 1], [], []>} : vector<2x32xbf16>, vector<32x128xbf16>, vector<2x128xf32> -> vector<2x128xf32>
    %81 = arith.addf %78, %80 : vector<2x128xf32>
    %82 = vector.extract_strided_slice %81 {offsets = [0, 0], sizes = [2, 32], strides = [1, 1]} : vector<2x128xf32> to vector<2x32xf32>
    %83 = arith.negf %82 : vector<2x32xf32>
    %84 = math.exp %83 : vector<2x32xf32>
    %cst_25 = arith.constant 1.000000e+00 : f32
    %85 = vector.broadcast %cst_25 : f32 to vector<2x32xf32>
    %86 = arith.addf %85, %84 : vector<2x32xf32>
    %87 = arith.divf %85, %86 : vector<2x32xf32>
    %88 = vector.extract_strided_slice %81 {offsets = [0, 32], sizes = [2, 32], strides = [1, 1]} : vector<2x128xf32> to vector<2x32xf32>
    %89 = arith.negf %88 : vector<2x32xf32>
    %90 = math.exp %89 : vector<2x32xf32>
    %cst_26 = arith.constant 1.000000e+00 : f32
    %91 = vector.broadcast %cst_26 : f32 to vector<2x32xf32>
    %92 = arith.addf %91, %90 : vector<2x32xf32>
    %93 = arith.divf %91, %92 : vector<2x32xf32>
    %94 = vector.extract_strided_slice %81 {offsets = [0, 64], sizes = [2, 32], strides = [1, 1]} : vector<2x128xf32> to vector<2x32xf32>
    %95 = math.tanh %94 : vector<2x32xf32>
    %96 = vector.extract_strided_slice %81 {offsets = [0, 96], sizes = [2, 32], strides = [1, 1]} : vector<2x128xf32> to vector<2x32xf32>
    %97 = arith.negf %96 : vector<2x32xf32>
    %98 = math.exp %97 : vector<2x32xf32>
    %cst_27 = arith.constant 1.000000e+00 : f32
    %99 = vector.broadcast %cst_27 : f32 to vector<2x32xf32>
    %100 = arith.addf %99, %98 : vector<2x32xf32>
    %101 = arith.divf %99, %100 : vector<2x32xf32>
    %102 = arith.mulf %93, %69 : vector<2x32xf32>
    %103 = arith.mulf %87, %95 : vector<2x32xf32>
    %104 = arith.addf %102, %103 : vector<2x32xf32>
    %105 = math.tanh %104 : vector<2x32xf32>
    %106 = arith.mulf %101, %105 : vector<2x32xf32>
    %107 = arith.index_cast %c2_i32 : i32 to index
    %c0_28 = arith.constant 0 : index
    %c0_29 = arith.constant 0 : index
    %108 = vector.load %arg3[%107, %c0_28, %c0_29] : memref<8x2x32xf32, #tpu.memory_space<vmem>>, vector<1x2x32xf32>
    %109 = vector.shape_cast %108 : vector<1x2x32xf32> to vector<2x32xf32>
    %110 = vector.shape_cast %106 : vector<2x32xf32> to vector<1x2x32xf32>
    tpu.vector_store %arg3[%107, %c0_28, %c0_29], %110 {strides = array<i32>} : memref<8x2x32xf32, #tpu.memory_space<vmem>>, vector<1x2x32xf32>,
    %c3_i32 = arith.constant 3 : i32
    %111 = arith.index_cast %c3_i32 : i32 to index
    %c0_30 = arith.constant 0 : index
    %c0_31 = arith.constant 0 : index
    %112 = vector.load %arg1[%111, %c0_30, %c0_31] : memref<8x2x128xf32, #tpu.memory_space<vmem>>, vector<1x2x128xf32>
    %113 = vector.shape_cast %112 : vector<1x2x128xf32> to vector<2x128xf32>
    %114 = arith.truncf %106 : vector<2x32xf32> to vector<2x32xbf16>
    %cst_32 = arith.constant dense<0.000000e+00> : vector<2x128xf32>
    %115 = tpu.matmul %114, %3, %cst_32 {dimension_numbers = #tpu.dot_dimension_numbers<[1], [0], [0], [1], [0, 0, 1, 1], [], []>} : vector<2x32xbf16>, vector<32x128xbf16>, vector<2x128xf32> -> vector<2x128xf32>
    %116 = arith.addf %113, %115 : vector<2x128xf32>
    %117 = vector.extract_strided_slice %116 {offsets = [0, 0], sizes = [2, 32], strides = [1, 1]} : vector<2x128xf32> to vector<2x32xf32>
    %118 = arith.negf %117 : vector<2x32xf32>
    %119 = math.exp %118 : vector<2x32xf32>
    %cst_33 = arith.constant 1.000000e+00 : f32
    %120 = vector.broadcast %cst_33 : f32 to vector<2x32xf32>
    %121 = arith.addf %120, %119 : vector<2x32xf32>
    %122 = arith.divf %120, %121 : vector<2x32xf32>
    %123 = vector.extract_strided_slice %116 {offsets = [0, 32], sizes = [2, 32], strides = [1, 1]} : vector<2x128xf32> to vector<2x32xf32>
    %124 = arith.negf %123 : vector<2x32xf32>
    %125 = math.exp %124 : vector<2x32xf32>
    %cst_34 = arith.constant 1.000000e+00 : f32
    %126 = vector.broadcast %cst_34 : f32 to vector<2x32xf32>
    %127 = arith.addf %126, %125 : vector<2x32xf32>
    %128 = arith.divf %126, %127 : vector<2x32xf32>
    %129 = vector.extract_strided_slice %116 {offsets = [0, 64], sizes = [2, 32], strides = [1, 1]} : vector<2x128xf32> to vector<2x32xf32>
    %130 = math.tanh %129 : vector<2x32xf32>
    %131 = vector.extract_strided_slice %116 {offsets = [0, 96], sizes = [2, 32], strides = [1, 1]} : vector<2x128xf32> to vector<2x32xf32>
    %132 = arith.negf %131 : vector<2x32xf32>
    %133 = math.exp %132 : vector<2x32xf32>
    %cst_35 = arith.constant 1.000000e+00 : f32
    %134 = vector.broadcast %cst_35 : f32 to vector<2x32xf32>
    %135 = arith.addf %134, %133 : vector<2x32xf32>
    %136 = arith.divf %134, %135 : vector<2x32xf32>
    %137 = arith.mulf %128, %104 : vector<2x32xf32>
    %138 = arith.mulf %122, %130 : vector<2x32xf32>
    %139 = arith.addf %137, %138 : vector<2x32xf32>
    %140 = math.tanh %139 : vector<2x32xf32>
    %141 = arith.mulf %136, %140 : vector<2x32xf32>
    %142 = arith.index_cast %c3_i32 : i32 to index
    %c0_36 = arith.constant 0 : index
    %c0_37 = arith.constant 0 : index
    %143 = vector.load %arg3[%142, %c0_36, %c0_37] : memref<8x2x32xf32, #tpu.memory_space<vmem>>, vector<1x2x32xf32>
    %144 = vector.shape_cast %143 : vector<1x2x32xf32> to vector<2x32xf32>
    %145 = vector.shape_cast %141 : vector<2x32xf32> to vector<1x2x32xf32>
    tpu.vector_store %arg3[%142, %c0_36, %c0_37], %145 {strides = array<i32>} : memref<8x2x32xf32, #tpu.memory_space<vmem>>, vector<1x2x32xf32>,
    %c4_i32 = arith.constant 4 : i32
    %146 = arith.index_cast %c4_i32 : i32 to index
    %c0_38 = arith.constant 0 : index
    %c0_39 = arith.constant 0 : index
    %147 = vector.load %arg1[%146, %c0_38, %c0_39] : memref<8x2x128xf32, #tpu.memory_space<vmem>>, vector<1x2x128xf32>
    %148 = vector.shape_cast %147 : vector<1x2x128xf32> to vector<2x128xf32>
    %149 = arith.truncf %141 : vector<2x32xf32> to vector<2x32xbf16>
    %cst_40 = arith.constant dense<0.000000e+00> : vector<2x128xf32>
    %150 = tpu.matmul %149, %3, %cst_40 {dimension_numbers = #tpu.dot_dimension_numbers<[1], [0], [0], [1], [0, 0, 1, 1], [], []>} : vector<2x32xbf16>, vector<32x128xbf16>, vector<2x128xf32> -> vector<2x128xf32>
    %151 = arith.addf %148, %150 : vector<2x128xf32>
    %152 = vector.extract_strided_slice %151 {offsets = [0, 0], sizes = [2, 32], strides = [1, 1]} : vector<2x128xf32> to vector<2x32xf32>
    %153 = arith.negf %152 : vector<2x32xf32>
    %154 = math.exp %153 : vector<2x32xf32>
    %cst_41 = arith.constant 1.000000e+00 : f32
    %155 = vector.broadcast %cst_41 : f32 to vector<2x32xf32>
    %156 = arith.addf %155, %154 : vector<2x32xf32>
    %157 = arith.divf %155, %156 : vector<2x32xf32>
    %158 = vector.extract_strided_slice %151 {offsets = [0, 32], sizes = [2, 32], strides = [1, 1]} : vector<2x128xf32> to vector<2x32xf32>
    %159 = arith.negf %158 : vector<2x32xf32>
    %160 = math.exp %159 : vector<2x32xf32>
    %cst_42 = arith.constant 1.000000e+00 : f32
    %161 = vector.broadcast %cst_42 : f32 to vector<2x32xf32>
    %162 = arith.addf %161, %160 : vector<2x32xf32>
    %163 = arith.divf %161, %162 : vector<2x32xf32>
    %164 = vector.extract_strided_slice %151 {offsets = [0, 64], sizes = [2, 32], strides = [1, 1]} : vector<2x128xf32> to vector<2x32xf32>
    %165 = math.tanh %164 : vector<2x32xf32>
    %166 = vector.extract_strided_slice %151 {offsets = [0, 96], sizes = [2, 32], strides = [1, 1]} : vector<2x128xf32> to vector<2x32xf32>
    %167 = arith.negf %166 : vector<2x32xf32>
    %168 = math.exp %167 : vector<2x32xf32>
    %cst_43 = arith.constant 1.000000e+00 : f32
    %169 = vector.broadcast %cst_43 : f32 to vector<2x32xf32>
    %170 = arith.addf %169, %168 : vector<2x32xf32>
    %171 = arith.divf %169, %170 : vector<2x32xf32>
    %172 = arith.mulf %163, %139 : vector<2x32xf32>
    %173 = arith.mulf %157, %165 : vector<2x32xf32>
    %174 = arith.addf %172, %173 : vector<2x32xf32>
    %175 = math.tanh %174 : vector<2x32xf32>
    %176 = arith.mulf %171, %175 : vector<2x32xf32>
    %177 = arith.index_cast %c4_i32 : i32 to index
    %c0_44 = arith.constant 0 : index
    %c0_45 = arith.constant 0 : index
    %178 = vector.load %arg3[%177, %c0_44, %c0_45] : memref<8x2x32xf32, #tpu.memory_space<vmem>>, vector<1x2x32xf32>
    %179 = vector.shape_cast %178 : vector<1x2x32xf32> to vector<2x32xf32>
    %180 = vector.shape_cast %176 : vector<2x32xf32> to vector<1x2x32xf32>
    tpu.vector_store %arg3[%177, %c0_44, %c0_45], %180 {strides = array<i32>} : memref<8x2x32xf32, #tpu.memory_space<vmem>>, vector<1x2x32xf32>,
    %c5_i32 = arith.constant 5 : i32
    %181 = arith.index_cast %c5_i32 : i32 to index
    %c0_46 = arith.constant 0 : index
    %c0_47 = arith.constant 0 : index
    %182 = vector.load %arg1[%181, %c0_46, %c0_47] : memref<8x2x128xf32, #tpu.memory_space<vmem>>, vector<1x2x128xf32>
    %183 = vector.shape_cast %182 : vector<1x2x128xf32> to vector<2x128xf32>
    %184 = arith.truncf %176 : vector<2x32xf32> to vector<2x32xbf16>
    %cst_48 = arith.constant dense<0.000000e+00> : vector<2x128xf32>
    %185 = tpu.matmul %184, %3, %cst_48 {dimension_numbers = #tpu.dot_dimension_numbers<[1], [0], [0], [1], [0, 0, 1, 1], [], []>} : vector<2x32xbf16>, vector<32x128xbf16>, vector<2x128xf32> -> vector<2x128xf32>
    %186 = arith.addf %183, %185 : vector<2x128xf32>
    %187 = vector.extract_strided_slice %186 {offsets = [0, 0], sizes = [2, 32], strides = [1, 1]} : vector<2x128xf32> to vector<2x32xf32>
    %188 = arith.negf %187 : vector<2x32xf32>
    %189 = math.exp %188 : vector<2x32xf32>
    %cst_49 = arith.constant 1.000000e+00 : f32
    %190 = vector.broadcast %cst_49 : f32 to vector<2x32xf32>
    %191 = arith.addf %190, %189 : vector<2x32xf32>
    %192 = arith.divf %190, %191 : vector<2x32xf32>
    %193 = vector.extract_strided_slice %186 {offsets = [0, 32], sizes = [2, 32], strides = [1, 1]} : vector<2x128xf32> to vector<2x32xf32>
    %194 = arith.negf %193 : vector<2x32xf32>
    %195 = math.exp %194 : vector<2x32xf32>
    %cst_50 = arith.constant 1.000000e+00 : f32
    %196 = vector.broadcast %cst_50 : f32 to vector<2x32xf32>
    %197 = arith.addf %196, %195 : vector<2x32xf32>
    %198 = arith.divf %196, %197 : vector<2x32xf32>
    %199 = vector.extract_strided_slice %186 {offsets = [0, 64], sizes = [2, 32], strides = [1, 1]} : vector<2x128xf32> to vector<2x32xf32>
    %200 = math.tanh %199 : vector<2x32xf32>
    %201 = vector.extract_strided_slice %186 {offsets = [0, 96], sizes = [2, 32], strides = [1, 1]} : vector<2x128xf32> to vector<2x32xf32>
    %202 = arith.negf %201 : vector<2x32xf32>
    %203 = math.exp %202 : vector<2x32xf32>
    %cst_51 = arith.constant 1.000000e+00 : f32
    %204 = vector.broadcast %cst_51 : f32 to vector<2x32xf32>
    %205 = arith.addf %204, %203 : vector<2x32xf32>
    %206 = arith.divf %204, %205 : vector<2x32xf32>
    %207 = arith.mulf %198, %174 : vector<2x32xf32>
    %208 = arith.mulf %192, %200 : vector<2x32xf32>
    %209 = arith.addf %207, %208 : vector<2x32xf32>
    %210 = math.tanh %209 : vector<2x32xf32>
    %211 = arith.mulf %206, %210 : vector<2x32xf32>
    %212 = arith.index_cast %c5_i32 : i32 to index
    %c0_52 = arith.constant 0 : index
    %c0_53 = arith.constant 0 : index
    %213 = vector.load %arg3[%212, %c0_52, %c0_53] : memref<8x2x32xf32, #tpu.memory_space<vmem>>, vector<1x2x32xf32>
    %214 = vector.shape_cast %213 : vector<1x2x32xf32> to vector<2x32xf32>
    %215 = vector.shape_cast %211 : vector<2x32xf32> to vector<1x2x32xf32>
    tpu.vector_store %arg3[%212, %c0_52, %c0_53], %215 {strides = array<i32>} : memref<8x2x32xf32, #tpu.memory_space<vmem>>, vector<1x2x32xf32>,
    %c6_i32 = arith.constant 6 : i32
    %216 = arith.index_cast %c6_i32 : i32 to index
    %c0_54 = arith.constant 0 : index
    %c0_55 = arith.constant 0 : index
    %217 = vector.load %arg1[%216, %c0_54, %c0_55] : memref<8x2x128xf32, #tpu.memory_space<vmem>>, vector<1x2x128xf32>
    %218 = vector.shape_cast %217 : vector<1x2x128xf32> to vector<2x128xf32>
    %219 = arith.truncf %211 : vector<2x32xf32> to vector<2x32xbf16>
    %cst_56 = arith.constant dense<0.000000e+00> : vector<2x128xf32>
    %220 = tpu.matmul %219, %3, %cst_56 {dimension_numbers = #tpu.dot_dimension_numbers<[1], [0], [0], [1], [0, 0, 1, 1], [], []>} : vector<2x32xbf16>, vector<32x128xbf16>, vector<2x128xf32> -> vector<2x128xf32>
    %221 = arith.addf %218, %220 : vector<2x128xf32>
    %222 = vector.extract_strided_slice %221 {offsets = [0, 0], sizes = [2, 32], strides = [1, 1]} : vector<2x128xf32> to vector<2x32xf32>
    %223 = arith.negf %222 : vector<2x32xf32>
    %224 = math.exp %223 : vector<2x32xf32>
    %cst_57 = arith.constant 1.000000e+00 : f32
    %225 = vector.broadcast %cst_57 : f32 to vector<2x32xf32>
    %226 = arith.addf %225, %224 : vector<2x32xf32>
    %227 = arith.divf %225, %226 : vector<2x32xf32>
    %228 = vector.extract_strided_slice %221 {offsets = [0, 32], sizes = [2, 32], strides = [1, 1]} : vector<2x128xf32> to vector<2x32xf32>
    %229 = arith.negf %228 : vector<2x32xf32>
    %230 = math.exp %229 : vector<2x32xf32>
    %cst_58 = arith.constant 1.000000e+00 : f32
    %231 = vector.broadcast %cst_58 : f32 to vector<2x32xf32>
    %232 = arith.addf %231, %230 : vector<2x32xf32>
    %233 = arith.divf %231, %232 : vector<2x32xf32>
    %234 = vector.extract_strided_slice %221 {offsets = [0, 64], sizes = [2, 32], strides = [1, 1]} : vector<2x128xf32> to vector<2x32xf32>
    %235 = math.tanh %234 : vector<2x32xf32>
    %236 = vector.extract_strided_slice %221 {offsets = [0, 96], sizes = [2, 32], strides = [1, 1]} : vector<2x128xf32> to vector<2x32xf32>
    %237 = arith.negf %236 : vector<2x32xf32>
    %238 = math.exp %237 : vector<2x32xf32>
    %cst_59 = arith.constant 1.000000e+00 : f32
    %239 = vector.broadcast %cst_59 : f32 to vector<2x32xf32>
    %240 = arith.addf %239, %238 : vector<2x32xf32>
    %241 = arith.divf %239, %240 : vector<2x32xf32>
    %242 = arith.mulf %233, %209 : vector<2x32xf32>
    %243 = arith.mulf %227, %235 : vector<2x32xf32>
    %244 = arith.addf %242, %243 : vector<2x32xf32>
    %245 = math.tanh %244 : vector<2x32xf32>
    %246 = arith.mulf %241, %245 : vector<2x32xf32>
    %247 = arith.index_cast %c6_i32 : i32 to index
    %c0_60 = arith.constant 0 : index
    %c0_61 = arith.constant 0 : index
    %248 = vector.load %arg3[%247, %c0_60, %c0_61] : memref<8x2x32xf32, #tpu.memory_space<vmem>>, vector<1x2x32xf32>
    %249 = vector.shape_cast %248 : vector<1x2x32xf32> to vector<2x32xf32>
    %250 = vector.shape_cast %246 : vector<2x32xf32> to vector<1x2x32xf32>
    tpu.vector_store %arg3[%247, %c0_60, %c0_61], %250 {strides = array<i32>} : memref<8x2x32xf32, #tpu.memory_space<vmem>>, vector<1x2x32xf32>,
    %c7_i32 = arith.constant 7 : i32
    %251 = arith.index_cast %c7_i32 : i32 to index
    %c0_62 = arith.constant 0 : index
    %c0_63 = arith.constant 0 : index
    %252 = vector.load %arg1[%251, %c0_62, %c0_63] : memref<8x2x128xf32, #tpu.memory_space<vmem>>, vector<1x2x128xf32>
    %253 = vector.shape_cast %252 : vector<1x2x128xf32> to vector<2x128xf32>
    %254 = arith.truncf %246 : vector<2x32xf32> to vector<2x32xbf16>
    %cst_64 = arith.constant dense<0.000000e+00> : vector<2x128xf32>
    %255 = tpu.matmul %254, %3, %cst_64 {dimension_numbers = #tpu.dot_dimension_numbers<[1], [0], [0], [1], [0, 0, 1, 1], [], []>} : vector<2x32xbf16>, vector<32x128xbf16>, vector<2x128xf32> -> vector<2x128xf32>
    %256 = arith.addf %253, %255 : vector<2x128xf32>
    %257 = vector.extract_strided_slice %256 {offsets = [0, 0], sizes = [2, 32], strides = [1, 1]} : vector<2x128xf32> to vector<2x32xf32>
    %258 = arith.negf %257 : vector<2x32xf32>
    %259 = math.exp %258 : vector<2x32xf32>
    %cst_65 = arith.constant 1.000000e+00 : f32
    %260 = vector.broadcast %cst_65 : f32 to vector<2x32xf32>
    %261 = arith.addf %260, %259 : vector<2x32xf32>
    %262 = arith.divf %260, %261 : vector<2x32xf32>
    %263 = vector.extract_strided_slice %256 {offsets = [0, 32], sizes = [2, 32], strides = [1, 1]} : vector<2x128xf32> to vector<2x32xf32>
    %264 = arith.negf %263 : vector<2x32xf32>
    %265 = math.exp %264 : vector<2x32xf32>
    %cst_66 = arith.constant 1.000000e+00 : f32
    %266 = vector.broadcast %cst_66 : f32 to vector<2x32xf32>
    %267 = arith.addf %266, %265 : vector<2x32xf32>
    %268 = arith.divf %266, %267 : vector<2x32xf32>
    %269 = vector.extract_strided_slice %256 {offsets = [0, 64], sizes = [2, 32], strides = [1, 1]} : vector<2x128xf32> to vector<2x32xf32>
    %270 = math.tanh %269 : vector<2x32xf32>
    %271 = vector.extract_strided_slice %256 {offsets = [0, 96], sizes = [2, 32], strides = [1, 1]} : vector<2x128xf32> to vector<2x32xf32>
    %272 = arith.negf %271 : vector<2x32xf32>
    %273 = math.exp %272 : vector<2x32xf32>
    %cst_67 = arith.constant 1.000000e+00 : f32
    %274 = vector.broadcast %cst_67 : f32 to vector<2x32xf32>
    %275 = arith.addf %274, %273 : vector<2x32xf32>
    %276 = arith.divf %274, %275 : vector<2x32xf32>
    %277 = arith.mulf %268, %244 : vector<2x32xf32>
    %278 = arith.mulf %262, %270 : vector<2x32xf32>
    %279 = arith.addf %277, %278 : vector<2x32xf32>
    %280 = math.tanh %279 : vector<2x32xf32>
    %281 = arith.mulf %276, %280 : vector<2x32xf32>
    %282 = arith.index_cast %c7_i32 : i32 to index
    %c0_68 = arith.constant 0 : index
    %c0_69 = arith.constant 0 : index
    %283 = vector.load %arg3[%282, %c0_68, %c0_69] : memref<8x2x32xf32, #tpu.memory_space<vmem>>, vector<1x2x32xf32>
    %284 = vector.shape_cast %283 : vector<1x2x32xf32> to vector<2x32xf32>
    %285 = vector.shape_cast %281 : vector<2x32xf32> to vector<1x2x32xf32>
    tpu.vector_store %arg3[%282, %c0_68, %c0_69], %285 {strides = array<i32>} : memref<8x2x32xf32, #tpu.memory_space<vmem>>, vector<1x2x32xf32>,
    %c8_i32 = arith.constant 8 : i32
    %c0_70 = arith.constant 0 : index
    %c0_71 = arith.constant 0 : index
    %286 = vector.load %arg4[%c0_70, %c0_71] : memref<2x32xf32, #tpu.memory_space<vmem>>, vector<2x32xf32>
    tpu.vector_store %arg4[%c0_70, %c0_71], %281 {strides = array<i32>} : memref<2x32xf32, #tpu.memory_space<vmem>>, vector<2x32xf32>,
    %c0_72 = arith.constant 0 : index
    %c0_73 = arith.constant 0 : index
    %287 = vector.load %arg5[%c0_72, %c0_73] : memref<2x32xf32, #tpu.memory_space<vmem>>, vector<2x32xf32>
    tpu.vector_store %arg5[%c0_72, %c0_73], %279 {strides = array<i32>} : memref<2x32xf32, #tpu.memory_space<vmem>>, vector<2x32xf32>,
    return
  }
  func.func @transform_0(%arg0: i32) -> (i32, i32, i32) {
    %c0_i32 = arith.constant 0 : i32
    %c0_i32_0 = arith.constant 0 : i32
    %c0_i32_1 = arith.constant 0 : i32
    return %arg0, %c0_i32, %c0_i32_0 : i32, i32, i32
  }
  func.func @transform_1(%arg0: i32) -> (i32, i32) {
    %c0_i32 = arith.constant 0 : i32
    %c0_i32_0 = arith.constant 0 : i32
    %c0_i32_1 = arith.constant 0 : i32
    return %c0_i32, %c0_i32_0 : i32, i32
  }
  func.func @transform_2(%arg0: i32) -> (i32, i32, i32) {
    %c0_i32 = arith.constant 0 : i32
    %c0_i32_0 = arith.constant 0 : i32
    %c0_i32_1 = arith.constant 0 : i32
    return %arg0, %c0_i32, %c0_i32_0 : i32, i32, i32
  }
}

module attributes {stable_mosaic.version = 11 : i64} {
  func.func @_lstm_final_kernel(%arg0: i32, %arg1: memref<8x2x128xf32, #tpu.memory_space<vmem>>, %arg2: memref<32x128xbf16, #tpu.memory_space<vmem>>, %arg3: memref<32x4xf32, #tpu.memory_space<vmem>>, %arg4: memref<1x4xf32, #tpu.memory_space<vmem>>, %arg5: memref<2x4xf32, #tpu.memory_space<vmem>>, %arg6: memref<2x32xf32, #tpu.memory_space<vmem>>, %arg7: memref<2x32xf32, #tpu.memory_space<vmem>>) attributes {dimension_semantics = [#tpu.dimension_semantics<arbitrary>], iteration_bounds = array<i64: 1>, scalar_prefetch = 0 : i64, scratch_operands = 2 : i64, tpu.core_type = #tpu.core_type<tc>, window_params = [{transform_indices = @transform_0, window_bounds = array<i64: 8, 2, 128>}, {pipeline_mode = #tpu.pipeline_mode<synchronous>, transform_indices = @transform_1, window_bounds = array<i64: 32, 128>}, {pipeline_mode = #tpu.pipeline_mode<synchronous>, transform_indices = @transform_2, window_bounds = array<i64: 32, 4>}, {pipeline_mode = #tpu.pipeline_mode<synchronous>, transform_indices = @transform_3, window_bounds = array<i64: 1, 4>}, {pipeline_mode = #tpu.pipeline_mode<synchronous>, transform_indices = @transform_4, window_bounds = array<i64: 2, 4>}]} {
    %c0_i32 = arith.constant 0 : i32
    %0 = arith.cmpi eq, %arg0, %c0_i32 : i32
    %1 = arith.extui %0 : i1 to i32
    %c0_i32_0 = arith.constant 0 : i32
    %2 = arith.cmpi ne, %1, %c0_i32_0 : i32
    scf.if %2 {
      %cst_60 = arith.constant 0.000000e+00 : f32
      %259 = vector.broadcast %cst_60 : f32 to vector<2x32xf32>
      %c0_61 = arith.constant 0 : index
      %c0_62 = arith.constant 0 : index
      %260 = vector.load %arg6[%c0_61, %c0_62] : memref<2x32xf32, #tpu.memory_space<vmem>>, vector<2x32xf32>
      tpu.vector_store %arg6[%c0_61, %c0_62], %259 {strides = array<i32>} : memref<2x32xf32, #tpu.memory_space<vmem>>, vector<2x32xf32>,
      %cst_63 = arith.constant 0.000000e+00 : f32
      %261 = vector.broadcast %cst_63 : f32 to vector<2x32xf32>
      %c0_64 = arith.constant 0 : index
      %c0_65 = arith.constant 0 : index
      %262 = vector.load %arg7[%c0_64, %c0_65] : memref<2x32xf32, #tpu.memory_space<vmem>>, vector<2x32xf32>
      tpu.vector_store %arg7[%c0_64, %c0_65], %261 {strides = array<i32>} : memref<2x32xf32, #tpu.memory_space<vmem>>, vector<2x32xf32>,
    } else {
    }
    %c0 = arith.constant 0 : index
    %c0_1 = arith.constant 0 : index
    %3 = vector.load %arg2[%c0, %c0_1] : memref<32x128xbf16, #tpu.memory_space<vmem>>, vector<32x128xbf16>
    %c0_2 = arith.constant 0 : index
    %c0_3 = arith.constant 0 : index
    %4 = vector.load %arg6[%c0_2, %c0_3] : memref<2x32xf32, #tpu.memory_space<vmem>>, vector<2x32xf32>
    %c0_4 = arith.constant 0 : index
    %c0_5 = arith.constant 0 : index
    %5 = vector.load %arg7[%c0_4, %c0_5] : memref<2x32xf32, #tpu.memory_space<vmem>>, vector<2x32xf32>
    %c0_i32_6 = arith.constant 0 : i32
    %6 = arith.index_cast %c0_i32_6 : i32 to index
    %c0_7 = arith.constant 0 : index
    %c0_8 = arith.constant 0 : index
    %7 = vector.load %arg1[%6, %c0_7, %c0_8] : memref<8x2x128xf32, #tpu.memory_space<vmem>>, vector<1x2x128xf32>
    %8 = vector.shape_cast %7 : vector<1x2x128xf32> to vector<2x128xf32>
    %9 = arith.truncf %4 : vector<2x32xf32> to vector<2x32xbf16>
    %cst = arith.constant dense<0.000000e+00> : vector<2x128xf32>
    %10 = tpu.matmul %9, %3, %cst {dimension_numbers = #tpu.dot_dimension_numbers<[1], [0], [0], [1], [0, 0, 1, 1], [], []>} : vector<2x32xbf16>, vector<32x128xbf16>, vector<2x128xf32> -> vector<2x128xf32>
    %11 = arith.addf %8, %10 : vector<2x128xf32>
    %12 = vector.extract_strided_slice %11 {offsets = [0, 0], sizes = [2, 32], strides = [1, 1]} : vector<2x128xf32> to vector<2x32xf32>
    %13 = arith.negf %12 : vector<2x32xf32>
    %14 = math.exp %13 : vector<2x32xf32>
    %cst_9 = arith.constant 1.000000e+00 : f32
    %15 = vector.broadcast %cst_9 : f32 to vector<2x32xf32>
    %16 = arith.addf %15, %14 : vector<2x32xf32>
    %17 = arith.divf %15, %16 : vector<2x32xf32>
    %18 = vector.extract_strided_slice %11 {offsets = [0, 32], sizes = [2, 32], strides = [1, 1]} : vector<2x128xf32> to vector<2x32xf32>
    %19 = arith.negf %18 : vector<2x32xf32>
    %20 = math.exp %19 : vector<2x32xf32>
    %cst_10 = arith.constant 1.000000e+00 : f32
    %21 = vector.broadcast %cst_10 : f32 to vector<2x32xf32>
    %22 = arith.addf %21, %20 : vector<2x32xf32>
    %23 = arith.divf %21, %22 : vector<2x32xf32>
    %24 = vector.extract_strided_slice %11 {offsets = [0, 64], sizes = [2, 32], strides = [1, 1]} : vector<2x128xf32> to vector<2x32xf32>
    %25 = math.tanh %24 : vector<2x32xf32>
    %26 = vector.extract_strided_slice %11 {offsets = [0, 96], sizes = [2, 32], strides = [1, 1]} : vector<2x128xf32> to vector<2x32xf32>
    %27 = arith.negf %26 : vector<2x32xf32>
    %28 = math.exp %27 : vector<2x32xf32>
    %cst_11 = arith.constant 1.000000e+00 : f32
    %29 = vector.broadcast %cst_11 : f32 to vector<2x32xf32>
    %30 = arith.addf %29, %28 : vector<2x32xf32>
    %31 = arith.divf %29, %30 : vector<2x32xf32>
    %32 = arith.mulf %23, %5 : vector<2x32xf32>
    %33 = arith.mulf %17, %25 : vector<2x32xf32>
    %34 = arith.addf %32, %33 : vector<2x32xf32>
    %35 = math.tanh %34 : vector<2x32xf32>
    %36 = arith.mulf %31, %35 : vector<2x32xf32>
    %c1_i32 = arith.constant 1 : i32
    %37 = arith.index_cast %c1_i32 : i32 to index
    %c0_12 = arith.constant 0 : index
    %c0_13 = arith.constant 0 : index
    %38 = vector.load %arg1[%37, %c0_12, %c0_13] : memref<8x2x128xf32, #tpu.memory_space<vmem>>, vector<1x2x128xf32>
    %39 = vector.shape_cast %38 : vector<1x2x128xf32> to vector<2x128xf32>
    %40 = arith.truncf %36 : vector<2x32xf32> to vector<2x32xbf16>
    %cst_14 = arith.constant dense<0.000000e+00> : vector<2x128xf32>
    %41 = tpu.matmul %40, %3, %cst_14 {dimension_numbers = #tpu.dot_dimension_numbers<[1], [0], [0], [1], [0, 0, 1, 1], [], []>} : vector<2x32xbf16>, vector<32x128xbf16>, vector<2x128xf32> -> vector<2x128xf32>
    %42 = arith.addf %39, %41 : vector<2x128xf32>
    %43 = vector.extract_strided_slice %42 {offsets = [0, 0], sizes = [2, 32], strides = [1, 1]} : vector<2x128xf32> to vector<2x32xf32>
    %44 = arith.negf %43 : vector<2x32xf32>
    %45 = math.exp %44 : vector<2x32xf32>
    %cst_15 = arith.constant 1.000000e+00 : f32
    %46 = vector.broadcast %cst_15 : f32 to vector<2x32xf32>
    %47 = arith.addf %46, %45 : vector<2x32xf32>
    %48 = arith.divf %46, %47 : vector<2x32xf32>
    %49 = vector.extract_strided_slice %42 {offsets = [0, 32], sizes = [2, 32], strides = [1, 1]} : vector<2x128xf32> to vector<2x32xf32>
    %50 = arith.negf %49 : vector<2x32xf32>
    %51 = math.exp %50 : vector<2x32xf32>
    %cst_16 = arith.constant 1.000000e+00 : f32
    %52 = vector.broadcast %cst_16 : f32 to vector<2x32xf32>
    %53 = arith.addf %52, %51 : vector<2x32xf32>
    %54 = arith.divf %52, %53 : vector<2x32xf32>
    %55 = vector.extract_strided_slice %42 {offsets = [0, 64], sizes = [2, 32], strides = [1, 1]} : vector<2x128xf32> to vector<2x32xf32>
    %56 = math.tanh %55 : vector<2x32xf32>
    %57 = vector.extract_strided_slice %42 {offsets = [0, 96], sizes = [2, 32], strides = [1, 1]} : vector<2x128xf32> to vector<2x32xf32>
    %58 = arith.negf %57 : vector<2x32xf32>
    %59 = math.exp %58 : vector<2x32xf32>
    %cst_17 = arith.constant 1.000000e+00 : f32
    %60 = vector.broadcast %cst_17 : f32 to vector<2x32xf32>
    %61 = arith.addf %60, %59 : vector<2x32xf32>
    %62 = arith.divf %60, %61 : vector<2x32xf32>
    %63 = arith.mulf %54, %34 : vector<2x32xf32>
    %64 = arith.mulf %48, %56 : vector<2x32xf32>
    %65 = arith.addf %63, %64 : vector<2x32xf32>
    %66 = math.tanh %65 : vector<2x32xf32>
    %67 = arith.mulf %62, %66 : vector<2x32xf32>
    %c2_i32 = arith.constant 2 : i32
    %68 = arith.index_cast %c2_i32 : i32 to index
    %c0_18 = arith.constant 0 : index
    %c0_19 = arith.constant 0 : index
    %69 = vector.load %arg1[%68, %c0_18, %c0_19] : memref<8x2x128xf32, #tpu.memory_space<vmem>>, vector<1x2x128xf32>
    %70 = vector.shape_cast %69 : vector<1x2x128xf32> to vector<2x128xf32>
    %71 = arith.truncf %67 : vector<2x32xf32> to vector<2x32xbf16>
    %cst_20 = arith.constant dense<0.000000e+00> : vector<2x128xf32>
    %72 = tpu.matmul %71, %3, %cst_20 {dimension_numbers = #tpu.dot_dimension_numbers<[1], [0], [0], [1], [0, 0, 1, 1], [], []>} : vector<2x32xbf16>, vector<32x128xbf16>, vector<2x128xf32> -> vector<2x128xf32>
    %73 = arith.addf %70, %72 : vector<2x128xf32>
    %74 = vector.extract_strided_slice %73 {offsets = [0, 0], sizes = [2, 32], strides = [1, 1]} : vector<2x128xf32> to vector<2x32xf32>
    %75 = arith.negf %74 : vector<2x32xf32>
    %76 = math.exp %75 : vector<2x32xf32>
    %cst_21 = arith.constant 1.000000e+00 : f32
    %77 = vector.broadcast %cst_21 : f32 to vector<2x32xf32>
    %78 = arith.addf %77, %76 : vector<2x32xf32>
    %79 = arith.divf %77, %78 : vector<2x32xf32>
    %80 = vector.extract_strided_slice %73 {offsets = [0, 32], sizes = [2, 32], strides = [1, 1]} : vector<2x128xf32> to vector<2x32xf32>
    %81 = arith.negf %80 : vector<2x32xf32>
    %82 = math.exp %81 : vector<2x32xf32>
    %cst_22 = arith.constant 1.000000e+00 : f32
    %83 = vector.broadcast %cst_22 : f32 to vector<2x32xf32>
    %84 = arith.addf %83, %82 : vector<2x32xf32>
    %85 = arith.divf %83, %84 : vector<2x32xf32>
    %86 = vector.extract_strided_slice %73 {offsets = [0, 64], sizes = [2, 32], strides = [1, 1]} : vector<2x128xf32> to vector<2x32xf32>
    %87 = math.tanh %86 : vector<2x32xf32>
    %88 = vector.extract_strided_slice %73 {offsets = [0, 96], sizes = [2, 32], strides = [1, 1]} : vector<2x128xf32> to vector<2x32xf32>
    %89 = arith.negf %88 : vector<2x32xf32>
    %90 = math.exp %89 : vector<2x32xf32>
    %cst_23 = arith.constant 1.000000e+00 : f32
    %91 = vector.broadcast %cst_23 : f32 to vector<2x32xf32>
    %92 = arith.addf %91, %90 : vector<2x32xf32>
    %93 = arith.divf %91, %92 : vector<2x32xf32>
    %94 = arith.mulf %85, %65 : vector<2x32xf32>
    %95 = arith.mulf %79, %87 : vector<2x32xf32>
    %96 = arith.addf %94, %95 : vector<2x32xf32>
    %97 = math.tanh %96 : vector<2x32xf32>
    %98 = arith.mulf %93, %97 : vector<2x32xf32>
    %c3_i32 = arith.constant 3 : i32
    %99 = arith.index_cast %c3_i32 : i32 to index
    %c0_24 = arith.constant 0 : index
    %c0_25 = arith.constant 0 : index
    %100 = vector.load %arg1[%99, %c0_24, %c0_25] : memref<8x2x128xf32, #tpu.memory_space<vmem>>, vector<1x2x128xf32>
    %101 = vector.shape_cast %100 : vector<1x2x128xf32> to vector<2x128xf32>
    %102 = arith.truncf %98 : vector<2x32xf32> to vector<2x32xbf16>
    %cst_26 = arith.constant dense<0.000000e+00> : vector<2x128xf32>
    %103 = tpu.matmul %102, %3, %cst_26 {dimension_numbers = #tpu.dot_dimension_numbers<[1], [0], [0], [1], [0, 0, 1, 1], [], []>} : vector<2x32xbf16>, vector<32x128xbf16>, vector<2x128xf32> -> vector<2x128xf32>
    %104 = arith.addf %101, %103 : vector<2x128xf32>
    %105 = vector.extract_strided_slice %104 {offsets = [0, 0], sizes = [2, 32], strides = [1, 1]} : vector<2x128xf32> to vector<2x32xf32>
    %106 = arith.negf %105 : vector<2x32xf32>
    %107 = math.exp %106 : vector<2x32xf32>
    %cst_27 = arith.constant 1.000000e+00 : f32
    %108 = vector.broadcast %cst_27 : f32 to vector<2x32xf32>
    %109 = arith.addf %108, %107 : vector<2x32xf32>
    %110 = arith.divf %108, %109 : vector<2x32xf32>
    %111 = vector.extract_strided_slice %104 {offsets = [0, 32], sizes = [2, 32], strides = [1, 1]} : vector<2x128xf32> to vector<2x32xf32>
    %112 = arith.negf %111 : vector<2x32xf32>
    %113 = math.exp %112 : vector<2x32xf32>
    %cst_28 = arith.constant 1.000000e+00 : f32
    %114 = vector.broadcast %cst_28 : f32 to vector<2x32xf32>
    %115 = arith.addf %114, %113 : vector<2x32xf32>
    %116 = arith.divf %114, %115 : vector<2x32xf32>
    %117 = vector.extract_strided_slice %104 {offsets = [0, 64], sizes = [2, 32], strides = [1, 1]} : vector<2x128xf32> to vector<2x32xf32>
    %118 = math.tanh %117 : vector<2x32xf32>
    %119 = vector.extract_strided_slice %104 {offsets = [0, 96], sizes = [2, 32], strides = [1, 1]} : vector<2x128xf32> to vector<2x32xf32>
    %120 = arith.negf %119 : vector<2x32xf32>
    %121 = math.exp %120 : vector<2x32xf32>
    %cst_29 = arith.constant 1.000000e+00 : f32
    %122 = vector.broadcast %cst_29 : f32 to vector<2x32xf32>
    %123 = arith.addf %122, %121 : vector<2x32xf32>
    %124 = arith.divf %122, %123 : vector<2x32xf32>
    %125 = arith.mulf %116, %96 : vector<2x32xf32>
    %126 = arith.mulf %110, %118 : vector<2x32xf32>
    %127 = arith.addf %125, %126 : vector<2x32xf32>
    %128 = math.tanh %127 : vector<2x32xf32>
    %129 = arith.mulf %124, %128 : vector<2x32xf32>
    %c4_i32 = arith.constant 4 : i32
    %130 = arith.index_cast %c4_i32 : i32 to index
    %c0_30 = arith.constant 0 : index
    %c0_31 = arith.constant 0 : index
    %131 = vector.load %arg1[%130, %c0_30, %c0_31] : memref<8x2x128xf32, #tpu.memory_space<vmem>>, vector<1x2x128xf32>
    %132 = vector.shape_cast %131 : vector<1x2x128xf32> to vector<2x128xf32>
    %133 = arith.truncf %129 : vector<2x32xf32> to vector<2x32xbf16>
    %cst_32 = arith.constant dense<0.000000e+00> : vector<2x128xf32>
    %134 = tpu.matmul %133, %3, %cst_32 {dimension_numbers = #tpu.dot_dimension_numbers<[1], [0], [0], [1], [0, 0, 1, 1], [], []>} : vector<2x32xbf16>, vector<32x128xbf16>, vector<2x128xf32> -> vector<2x128xf32>
    %135 = arith.addf %132, %134 : vector<2x128xf32>
    %136 = vector.extract_strided_slice %135 {offsets = [0, 0], sizes = [2, 32], strides = [1, 1]} : vector<2x128xf32> to vector<2x32xf32>
    %137 = arith.negf %136 : vector<2x32xf32>
    %138 = math.exp %137 : vector<2x32xf32>
    %cst_33 = arith.constant 1.000000e+00 : f32
    %139 = vector.broadcast %cst_33 : f32 to vector<2x32xf32>
    %140 = arith.addf %139, %138 : vector<2x32xf32>
    %141 = arith.divf %139, %140 : vector<2x32xf32>
    %142 = vector.extract_strided_slice %135 {offsets = [0, 32], sizes = [2, 32], strides = [1, 1]} : vector<2x128xf32> to vector<2x32xf32>
    %143 = arith.negf %142 : vector<2x32xf32>
    %144 = math.exp %143 : vector<2x32xf32>
    %cst_34 = arith.constant 1.000000e+00 : f32
    %145 = vector.broadcast %cst_34 : f32 to vector<2x32xf32>
    %146 = arith.addf %145, %144 : vector<2x32xf32>
    %147 = arith.divf %145, %146 : vector<2x32xf32>
    %148 = vector.extract_strided_slice %135 {offsets = [0, 64], sizes = [2, 32], strides = [1, 1]} : vector<2x128xf32> to vector<2x32xf32>
    %149 = math.tanh %148 : vector<2x32xf32>
    %150 = vector.extract_strided_slice %135 {offsets = [0, 96], sizes = [2, 32], strides = [1, 1]} : vector<2x128xf32> to vector<2x32xf32>
    %151 = arith.negf %150 : vector<2x32xf32>
    %152 = math.exp %151 : vector<2x32xf32>
    %cst_35 = arith.constant 1.000000e+00 : f32
    %153 = vector.broadcast %cst_35 : f32 to vector<2x32xf32>
    %154 = arith.addf %153, %152 : vector<2x32xf32>
    %155 = arith.divf %153, %154 : vector<2x32xf32>
    %156 = arith.mulf %147, %127 : vector<2x32xf32>
    %157 = arith.mulf %141, %149 : vector<2x32xf32>
    %158 = arith.addf %156, %157 : vector<2x32xf32>
    %159 = math.tanh %158 : vector<2x32xf32>
    %160 = arith.mulf %155, %159 : vector<2x32xf32>
    %c5_i32 = arith.constant 5 : i32
    %161 = arith.index_cast %c5_i32 : i32 to index
    %c0_36 = arith.constant 0 : index
    %c0_37 = arith.constant 0 : index
    %162 = vector.load %arg1[%161, %c0_36, %c0_37] : memref<8x2x128xf32, #tpu.memory_space<vmem>>, vector<1x2x128xf32>
    %163 = vector.shape_cast %162 : vector<1x2x128xf32> to vector<2x128xf32>
    %164 = arith.truncf %160 : vector<2x32xf32> to vector<2x32xbf16>
    %cst_38 = arith.constant dense<0.000000e+00> : vector<2x128xf32>
    %165 = tpu.matmul %164, %3, %cst_38 {dimension_numbers = #tpu.dot_dimension_numbers<[1], [0], [0], [1], [0, 0, 1, 1], [], []>} : vector<2x32xbf16>, vector<32x128xbf16>, vector<2x128xf32> -> vector<2x128xf32>
    %166 = arith.addf %163, %165 : vector<2x128xf32>
    %167 = vector.extract_strided_slice %166 {offsets = [0, 0], sizes = [2, 32], strides = [1, 1]} : vector<2x128xf32> to vector<2x32xf32>
    %168 = arith.negf %167 : vector<2x32xf32>
    %169 = math.exp %168 : vector<2x32xf32>
    %cst_39 = arith.constant 1.000000e+00 : f32
    %170 = vector.broadcast %cst_39 : f32 to vector<2x32xf32>
    %171 = arith.addf %170, %169 : vector<2x32xf32>
    %172 = arith.divf %170, %171 : vector<2x32xf32>
    %173 = vector.extract_strided_slice %166 {offsets = [0, 32], sizes = [2, 32], strides = [1, 1]} : vector<2x128xf32> to vector<2x32xf32>
    %174 = arith.negf %173 : vector<2x32xf32>
    %175 = math.exp %174 : vector<2x32xf32>
    %cst_40 = arith.constant 1.000000e+00 : f32
    %176 = vector.broadcast %cst_40 : f32 to vector<2x32xf32>
    %177 = arith.addf %176, %175 : vector<2x32xf32>
    %178 = arith.divf %176, %177 : vector<2x32xf32>
    %179 = vector.extract_strided_slice %166 {offsets = [0, 64], sizes = [2, 32], strides = [1, 1]} : vector<2x128xf32> to vector<2x32xf32>
    %180 = math.tanh %179 : vector<2x32xf32>
    %181 = vector.extract_strided_slice %166 {offsets = [0, 96], sizes = [2, 32], strides = [1, 1]} : vector<2x128xf32> to vector<2x32xf32>
    %182 = arith.negf %181 : vector<2x32xf32>
    %183 = math.exp %182 : vector<2x32xf32>
    %cst_41 = arith.constant 1.000000e+00 : f32
    %184 = vector.broadcast %cst_41 : f32 to vector<2x32xf32>
    %185 = arith.addf %184, %183 : vector<2x32xf32>
    %186 = arith.divf %184, %185 : vector<2x32xf32>
    %187 = arith.mulf %178, %158 : vector<2x32xf32>
    %188 = arith.mulf %172, %180 : vector<2x32xf32>
    %189 = arith.addf %187, %188 : vector<2x32xf32>
    %190 = math.tanh %189 : vector<2x32xf32>
    %191 = arith.mulf %186, %190 : vector<2x32xf32>
    %c6_i32 = arith.constant 6 : i32
    %192 = arith.index_cast %c6_i32 : i32 to index
    %c0_42 = arith.constant 0 : index
    %c0_43 = arith.constant 0 : index
    %193 = vector.load %arg1[%192, %c0_42, %c0_43] : memref<8x2x128xf32, #tpu.memory_space<vmem>>, vector<1x2x128xf32>
    %194 = vector.shape_cast %193 : vector<1x2x128xf32> to vector<2x128xf32>
    %195 = arith.truncf %191 : vector<2x32xf32> to vector<2x32xbf16>
    %cst_44 = arith.constant dense<0.000000e+00> : vector<2x128xf32>
    %196 = tpu.matmul %195, %3, %cst_44 {dimension_numbers = #tpu.dot_dimension_numbers<[1], [0], [0], [1], [0, 0, 1, 1], [], []>} : vector<2x32xbf16>, vector<32x128xbf16>, vector<2x128xf32> -> vector<2x128xf32>
    %197 = arith.addf %194, %196 : vector<2x128xf32>
    %198 = vector.extract_strided_slice %197 {offsets = [0, 0], sizes = [2, 32], strides = [1, 1]} : vector<2x128xf32> to vector<2x32xf32>
    %199 = arith.negf %198 : vector<2x32xf32>
    %200 = math.exp %199 : vector<2x32xf32>
    %cst_45 = arith.constant 1.000000e+00 : f32
    %201 = vector.broadcast %cst_45 : f32 to vector<2x32xf32>
    %202 = arith.addf %201, %200 : vector<2x32xf32>
    %203 = arith.divf %201, %202 : vector<2x32xf32>
    %204 = vector.extract_strided_slice %197 {offsets = [0, 32], sizes = [2, 32], strides = [1, 1]} : vector<2x128xf32> to vector<2x32xf32>
    %205 = arith.negf %204 : vector<2x32xf32>
    %206 = math.exp %205 : vector<2x32xf32>
    %cst_46 = arith.constant 1.000000e+00 : f32
    %207 = vector.broadcast %cst_46 : f32 to vector<2x32xf32>
    %208 = arith.addf %207, %206 : vector<2x32xf32>
    %209 = arith.divf %207, %208 : vector<2x32xf32>
    %210 = vector.extract_strided_slice %197 {offsets = [0, 64], sizes = [2, 32], strides = [1, 1]} : vector<2x128xf32> to vector<2x32xf32>
    %211 = math.tanh %210 : vector<2x32xf32>
    %212 = vector.extract_strided_slice %197 {offsets = [0, 96], sizes = [2, 32], strides = [1, 1]} : vector<2x128xf32> to vector<2x32xf32>
    %213 = arith.negf %212 : vector<2x32xf32>
    %214 = math.exp %213 : vector<2x32xf32>
    %cst_47 = arith.constant 1.000000e+00 : f32
    %215 = vector.broadcast %cst_47 : f32 to vector<2x32xf32>
    %216 = arith.addf %215, %214 : vector<2x32xf32>
    %217 = arith.divf %215, %216 : vector<2x32xf32>
    %218 = arith.mulf %209, %189 : vector<2x32xf32>
    %219 = arith.mulf %203, %211 : vector<2x32xf32>
    %220 = arith.addf %218, %219 : vector<2x32xf32>
    %221 = math.tanh %220 : vector<2x32xf32>
    %222 = arith.mulf %217, %221 : vector<2x32xf32>
    %c7_i32 = arith.constant 7 : i32
    %223 = arith.index_cast %c7_i32 : i32 to index
    %c0_48 = arith.constant 0 : index
    %c0_49 = arith.constant 0 : index
    %224 = vector.load %arg1[%223, %c0_48, %c0_49] : memref<8x2x128xf32, #tpu.memory_space<vmem>>, vector<1x2x128xf32>
    %225 = vector.shape_cast %224 : vector<1x2x128xf32> to vector<2x128xf32>
    %226 = arith.truncf %222 : vector<2x32xf32> to vector<2x32xbf16>
    %cst_50 = arith.constant dense<0.000000e+00> : vector<2x128xf32>
    %227 = tpu.matmul %226, %3, %cst_50 {dimension_numbers = #tpu.dot_dimension_numbers<[1], [0], [0], [1], [0, 0, 1, 1], [], []>} : vector<2x32xbf16>, vector<32x128xbf16>, vector<2x128xf32> -> vector<2x128xf32>
    %228 = arith.addf %225, %227 : vector<2x128xf32>
    %229 = vector.extract_strided_slice %228 {offsets = [0, 0], sizes = [2, 32], strides = [1, 1]} : vector<2x128xf32> to vector<2x32xf32>
    %230 = arith.negf %229 : vector<2x32xf32>
    %231 = math.exp %230 : vector<2x32xf32>
    %cst_51 = arith.constant 1.000000e+00 : f32
    %232 = vector.broadcast %cst_51 : f32 to vector<2x32xf32>
    %233 = arith.addf %232, %231 : vector<2x32xf32>
    %234 = arith.divf %232, %233 : vector<2x32xf32>
    %235 = vector.extract_strided_slice %228 {offsets = [0, 32], sizes = [2, 32], strides = [1, 1]} : vector<2x128xf32> to vector<2x32xf32>
    %236 = arith.negf %235 : vector<2x32xf32>
    %237 = math.exp %236 : vector<2x32xf32>
    %cst_52 = arith.constant 1.000000e+00 : f32
    %238 = vector.broadcast %cst_52 : f32 to vector<2x32xf32>
    %239 = arith.addf %238, %237 : vector<2x32xf32>
    %240 = arith.divf %238, %239 : vector<2x32xf32>
    %241 = vector.extract_strided_slice %228 {offsets = [0, 64], sizes = [2, 32], strides = [1, 1]} : vector<2x128xf32> to vector<2x32xf32>
    %242 = math.tanh %241 : vector<2x32xf32>
    %243 = vector.extract_strided_slice %228 {offsets = [0, 96], sizes = [2, 32], strides = [1, 1]} : vector<2x128xf32> to vector<2x32xf32>
    %244 = arith.negf %243 : vector<2x32xf32>
    %245 = math.exp %244 : vector<2x32xf32>
    %cst_53 = arith.constant 1.000000e+00 : f32
    %246 = vector.broadcast %cst_53 : f32 to vector<2x32xf32>
    %247 = arith.addf %246, %245 : vector<2x32xf32>
    %248 = arith.divf %246, %247 : vector<2x32xf32>
    %249 = arith.mulf %240, %220 : vector<2x32xf32>
    %250 = arith.mulf %234, %242 : vector<2x32xf32>
    %251 = arith.addf %249, %250 : vector<2x32xf32>
    %252 = math.tanh %251 : vector<2x32xf32>
    %253 = arith.mulf %248, %252 : vector<2x32xf32>
    %c8_i32 = arith.constant 8 : i32
    %c0_54 = arith.constant 0 : index
    %c0_55 = arith.constant 0 : index
    %254 = vector.load %arg6[%c0_54, %c0_55] : memref<2x32xf32, #tpu.memory_space<vmem>>, vector<2x32xf32>
    tpu.vector_store %arg6[%c0_54, %c0_55], %253 {strides = array<i32>} : memref<2x32xf32, #tpu.memory_space<vmem>>, vector<2x32xf32>,
    %c0_56 = arith.constant 0 : index
    %c0_57 = arith.constant 0 : index
    %255 = vector.load %arg7[%c0_56, %c0_57] : memref<2x32xf32, #tpu.memory_space<vmem>>, vector<2x32xf32>
    tpu.vector_store %arg7[%c0_56, %c0_57], %251 {strides = array<i32>} : memref<2x32xf32, #tpu.memory_space<vmem>>, vector<2x32xf32>,
    %c0_i32_58 = arith.constant 0 : i32
    %256 = arith.cmpi eq, %arg0, %c0_i32_58 : i32
    %257 = arith.extui %256 : i1 to i32
    %c0_i32_59 = arith.constant 0 : i32
    %258 = arith.cmpi ne, %257, %c0_i32_59 : i32
    scf.if %258 {
      %c0_60 = arith.constant 0 : index
      %c0_61 = arith.constant 0 : index
      %259 = vector.load %arg3[%c0_60, %c0_61] : memref<32x4xf32, #tpu.memory_space<vmem>>, vector<32x4xf32>
      %cst_62 = arith.constant dense<0.000000e+00> : vector<2x4xf32>
      %260 = tpu.matmul %253, %259, %cst_62 {dimension_numbers = #tpu.dot_dimension_numbers<[1], [0], [0], [1], [0, 0, 1, 1], [], []>} : vector<2x32xf32>, vector<32x4xf32>, vector<2x4xf32> -> vector<2x4xf32>
      %c0_63 = arith.constant 0 : index
      %c0_64 = arith.constant 0 : index
      %261 = vector.load %arg4[%c0_63, %c0_64] : memref<1x4xf32, #tpu.memory_space<vmem>>, vector<1x4xf32>
      %262 = vector.broadcast %261 : vector<1x4xf32> to vector<2x4xf32>
      %263 = arith.addf %260, %262 : vector<2x4xf32>
      %c0_65 = arith.constant 0 : index
      %c0_66 = arith.constant 0 : index
      %264 = vector.load %arg5[%c0_65, %c0_66] : memref<2x4xf32, #tpu.memory_space<vmem>>, vector<2x4xf32>
      tpu.vector_store %arg5[%c0_65, %c0_66], %263 {strides = array<i32>} : memref<2x4xf32, #tpu.memory_space<vmem>>, vector<2x4xf32>,
    } else {
    }
    return
  }
  func.func @transform_0(%arg0: i32) -> (i32, i32, i32) {
    %c0_i32 = arith.constant 0 : i32
    %c0_i32_0 = arith.constant 0 : i32
    %c0_i32_1 = arith.constant 0 : i32
    return %arg0, %c0_i32, %c0_i32_0 : i32, i32, i32
  }
  func.func @transform_1(%arg0: i32) -> (i32, i32) {
    %c0_i32 = arith.constant 0 : i32
    %c0_i32_0 = arith.constant 0 : i32
    %c0_i32_1 = arith.constant 0 : i32
    return %c0_i32, %c0_i32_0 : i32, i32
  }
  func.func @transform_2(%arg0: i32) -> (i32, i32) {
    %c0_i32 = arith.constant 0 : i32
    %c0_i32_0 = arith.constant 0 : i32
    %c0_i32_1 = arith.constant 0 : i32
    return %c0_i32, %c0_i32_0 : i32, i32
  }
  func.func @transform_3(%arg0: i32) -> (i32, i32) {
    %c0_i32 = arith.constant 0 : i32
    %c0_i32_0 = arith.constant 0 : i32
    %c0_i32_1 = arith.constant 0 : i32
    return %c0_i32, %c0_i32_0 : i32, i32
  }
  func.func @transform_4(%arg0: i32) -> (i32, i32) {
    %c0_i32 = arith.constant 0 : i32
    %c0_i32_0 = arith.constant 0 : i32
    %c0_i32_1 = arith.constant 0 : i32
    return %c0_i32, %c0_i32_0 : i32, i32
  }
}

</mosaic_0001>

<llo_original>
// kernel: lstm_norm_forward.4
$region0: #{lstm_norm_forward.4}
  #allocation0 [shape = 'u32[]', space=smem, size = 0x4, offset = 0x4, fixed_abs, tag = 'smem constant byte address 0x4 - core index']
  #allocation1 [shape = 'u32[144,128]{1,0:T(1,128)}', space=vmem, size = 0x12000, scoped, tag = 'internal scratch']
  %s0 = inlined_call_operand.vmem [shape: f32[16,16], index: 0, kind: input, shape index: {}]
  %s1 = inlined_call_operand.vmem [shape: bf16[16,128], index: 1, kind: input, shape index: {}]
  %s2 = inlined_call_operand.vmem [shape: f32[1,128], index: 2, kind: input, shape index: {}]
  %s3 = inlined_call_operand.vmem [shape: f32[16,128], index: 3, kind: output, shape index: {}]
  %s4 = sld [smem:[#allocation0]]
  $region22: #{lstm_norm_forward.4} parent=0
    _
  %s6 = ssub.s32 1, %s4
  %s7 = scalar_select 0, %s6, %s4
  // Predicated region
  $region2: #{lstm_norm_forward.4} parent=0 // pred_check
    _
  $region3: #{lstm_norm_forward.4} parent=0 // pred_check_branch
    %9 = sbr.rel (0) target = $region5
  $region4: #{lstm_norm_forward.4} parent=0 // pred_region
    _
  $region5: #{lstm_norm_forward.4} parent=0 // pred_fallthru
    _
  // Predicated region
  $region6: #{lstm_norm_forward.4} parent=0 // pred_check
    _
  $region7: #{lstm_norm_forward.4} parent=0 // pred_check_branch
    %11 = sbr.rel (0) target = $region9
  $region8: #{lstm_norm_forward.4} parent=0 // pred_region
    _
  $region9: #{lstm_norm_forward.4} parent=0 // pred_fallthru
    _
  // Predicated region
  $region10: #{lstm_norm_forward.4} parent=0 // pred_check
    _
  $region11: #{lstm_norm_forward.4} parent=0 // pred_check_branch
    %13 = sbr.rel (0) target = $region13
  $region12: #{lstm_norm_forward.4} parent=0 // pred_region
    _
  $region13: #{lstm_norm_forward.4} parent=0 // pred_fallthru
    _
  %v15 = vld [vmem:[%s0] sm:$0xff]
  %v16 = vld [vmem:[%s0 + $0x8] sm:$0xff]
  %v17 = vpack.c.bf16 %v16, %v15
  %v18 = vld [vmem:[%s1] sm:$0xf]
  %v19 = vld [vmem:[%s1 + $0x4] sm:$0xf]
  %v20 = vld [vmem:[%s2] sm:$0x1]
  %v22 = vlaneseq
  %v23 = vshrl.u32 %v22, 7
  %v24 = vsub.s32 0, %v23
  %v25 = vrot.slane %v20, %v24
  %v29 = vunpack.c.l.b16 %v18
  %v30 = vunpack.c.l.b16 %v19
  %v31 = vpack.c.b16 %v30, %v29
  %vm33 = vcmask 130048
  %v35 = vsel %vm33, %v17, 0
  %37 = vmatprep.subr.bf16.mxu0 0
  %38 = vmatpush1.bf16.msra.mxu0 %v31
  %39 = vmatprep.subr.bf16.mxu0 0
  %40 = vmatpush1.bf16.msra.mxu0 0
  %41 = vmatprep.subr.bf16.mxu0 0
  %42 = vmatpush1.bf16.msra.mxu0 0
  %43 = vmatprep.subr.bf16.mxu0 0
  %44 = vmatpush1.bf16.msra.mxu0 0
  %45 = vmatprep.subr.bf16.mxu0 0
  %46 = vmatpush1.bf16.msra.mxu0 0
  %47 = vmatprep.subr.bf16.mxu0 0
  %48 = vmatpush1.bf16.msra.mxu0 0
  %49 = vmatprep.subr.bf16.mxu0 0
  %50 = vmatpush1.bf16.msra.mxu0 0
  %51 = vmatprep.subr.bf16.mxu0 0
  %52 = vmatpush1.bf16.msra.mxu0 0
  %53 = vmatprep.subr.bf16.mxu0 0
  %54 = vmatpush1.bf16.msra.mxu0 0
  %55 = vmatprep.subr.bf16.mxu0 0
  %56 = vmatpush1.bf16.msra.mxu0 0
  %57 = vmatprep.subr.bf16.mxu0 0
  %58 = vmatpush1.bf16.msra.mxu0 0
  %59 = vmatprep.subr.bf16.mxu0 0
  %60 = vmatpush1.bf16.msra.mxu0 0
  %61 = vmatprep.subr.bf16.mxu0 0
  %62 = vmatpush1.bf16.msra.mxu0 0
  %63 = vmatprep.subr.bf16.mxu0 0
  %64 = vmatpush1.bf16.msra.mxu0 0
  %65 = vmatprep.subr.bf16.mxu0 0
  %66 = vmatpush1.bf16.msra.mxu0 0
  %67 = vmatprep.subr.bf16.mxu0 0
  %68 = vmatpush1.bf16.msra.mxu0 0
  %69 = vmatprep.mubr.bf16.mxu0 0
  %70 = vmatmul.mubr.bf16.gmra.mrb[0].mxu0 %v35
  %v71 = vpop.f32.mrb[0].mxu0
  %v72 = vadd.f32 %v25, %v71
  %v73 = vpop.f32.mrb[0].mxu0
  %v74 = vpop.f32.mrb[0].mxu0
  %v75 = vadd.f32 %v25, %v74
  %v76 = vpop.f32.mrb[0].mxu0
  %77 = vdwg.mxu0
  %78 = vst [vmem:[%s3] sm:$0xff] %v72
  %79 = vst [vmem:[%s3 + $0x8] sm:$0xff] %v75
  // Predicated region
  $region14: #{lstm_norm_forward.4} parent=0 // pred_check
    _
  $region15: #{lstm_norm_forward.4} parent=0 // pred_check_branch
    %81 = sbr.rel (0) target = $region17
  $region16: #{lstm_norm_forward.4} parent=0 // pred_region
    _
  $region17: #{lstm_norm_forward.4} parent=0 // pred_fallthru
    _
  // Predicated region
  $region18: #{lstm_norm_forward.4} parent=0 // pred_check
    _
  $region19: #{lstm_norm_forward.4} parent=0 // pred_check_branch
    %83 = sbr.rel (0) target = $region21
  $region20: #{lstm_norm_forward.4} parent=0 // pred_region
    _
  $region21: #{lstm_norm_forward.4} parent=0 // pred_fallthru
    _

// kernel: lstm_norm_forward.6
$region0: #{lstm_norm_forward.6}
  #allocation0 [shape = 'u32[]', space=smem, size = 0x4, offset = 0x4, fixed_abs, tag = 'smem constant byte address 0x4 - core index']
  #allocation1 [shape = 'u32[144,128]{1,0:T(1,128)}', space=vmem, size = 0x12000, scoped, tag = 'internal scratch']
  %s0 = inlined_call_operand.vmem [shape: f32[16,32], index: 0, kind: input, shape index: {}]
  %s1 = inlined_call_operand.vmem [shape: bf16[32,128], index: 1, kind: input, shape index: {}]
  %s2 = inlined_call_operand.vmem [shape: f32[1,128], index: 2, kind: input, shape index: {}]
  %s3 = inlined_call_operand.vmem [shape: f32[16,128], index: 3, kind: output, shape index: {}]
  %s4 = sld [smem:[#allocation0]]
  $region22: #{lstm_norm_forward.6} parent=0
    _
  %s6 = ssub.s32 1, %s4
  %s7 = scalar_select 0, %s6, %s4
  // Predicated region
  $region2: #{lstm_norm_forward.6} parent=0 // pred_check
    _
  $region3: #{lstm_norm_forward.6} parent=0 // pred_check_branch
    %9 = sbr.rel (0) target = $region5
  $region4: #{lstm_norm_forward.6} parent=0 // pred_region
    _
  $region5: #{lstm_norm_forward.6} parent=0 // pred_fallthru
    _
  // Predicated region
  $region6: #{lstm_norm_forward.6} parent=0 // pred_check
    _
  $region7: #{lstm_norm_forward.6} parent=0 // pred_check_branch
    %11 = sbr.rel (0) target = $region9
  $region8: #{lstm_norm_forward.6} parent=0 // pred_region
    _
  $region9: #{lstm_norm_forward.6} parent=0 // pred_fallthru
    _
  // Predicated region
  $region10: #{lstm_norm_forward.6} parent=0 // pred_check
    _
  $region11: #{lstm_norm_forward.6} parent=0 // pred_check_branch
    %13 = sbr.rel (0) target = $region13
  $region12: #{lstm_norm_forward.6} parent=0 // pred_region
    _
  $region13: #{lstm_norm_forward.6} parent=0 // pred_fallthru
    _
  %v15 = vld [vmem:[%s0] sm:$0xff]
  %v16 = vld [vmem:[%s0 + $0x8] sm:$0xff]
  %v17 = vpack.c.bf16 %v16, %v15
  %v18 = vld [vmem:[%s1] sm:$0xf]
  %v19 = vld [vmem:[%s1 + $0x4] sm:$0xf]
  %v20 = vld [vmem:[%s1 + $0x8] sm:$0xf]
  %v21 = vld [vmem:[%s1 + $0xc] sm:$0xf]
  %v22 = vld [vmem:[%s2] sm:$0x1]
  %v24 = vlaneseq
  %v25 = vshrl.u32 %v24, 7
  %v26 = vsub.s32 0, %v25
  %v27 = vrot.slane %v22, %v26
  %v33 = vunpack.c.l.b16 %v18
  %v34 = vunpack.c.l.b16 %v19
  %v35 = vunpack.c.l.b16 %v20
  %v36 = vunpack.c.l.b16 %v21
  %v37 = vpack.c.b16 %v34, %v33
  %v38 = vpack.c.b16 %v36, %v35
  %vm41 = vcmask 261120
  %v43 = vsel %vm41, %v17, 0
  %45 = vmatprep.subr.bf16.mxu0 0
  %46 = vmatpush1.bf16.msra.mxu0 %v37
  %47 = vmatprep.subr.bf16.mxu0 0
  %48 = vmatpush1.bf16.msra.mxu0 %v38
  %49 = vmatprep.subr.bf16.mxu0 0
  %50 = vmatpush1.bf16.msra.mxu0 0
  %51 = vmatprep.subr.bf16.mxu0 0
  %52 = vmatpush1.bf16.msra.mxu0 0
  %53 = vmatprep.subr.bf16.mxu0 0
  %54 = vmatpush1.bf16.msra.mxu0 0
  %55 = vmatprep.subr.bf16.mxu0 0
  %56 = vmatpush1.bf16.msra.mxu0 0
  %57 = vmatprep.subr.bf16.mxu0 0
  %58 = vmatpush1.bf16.msra.mxu0 0
  %59 = vmatprep.subr.bf16.mxu0 0
  %60 = vmatpush1.bf16.msra.mxu0 0
  %61 = vmatprep.subr.bf16.mxu0 0
  %62 = vmatpush1.bf16.msra.mxu0 0
  %63 = vmatprep.subr.bf16.mxu0 0
  %64 = vmatpush1.bf16.msra.mxu0 0
  %65 = vmatprep.subr.bf16.mxu0 0
  %66 = vmatpush1.bf16.msra.mxu0 0
  %67 = vmatprep.subr.bf16.mxu0 0
  %68 = vmatpush1.bf16.msra.mxu0 0
  %69 = vmatprep.subr.bf16.mxu0 0
  %70 = vmatpush1.bf16.msra.mxu0 0
  %71 = vmatprep.subr.bf16.mxu0 0
  %72 = vmatpush1.bf16.msra.mxu0 0
  %73 = vmatprep.subr.bf16.mxu0 0
  %74 = vmatpush1.bf16.msra.mxu0 0
  %75 = vmatprep.subr.bf16.mxu0 0
  %76 = vmatpush1.bf16.msra.mxu0 0
  %77 = vmatprep.mubr.bf16.mxu0 0
  %78 = vmatmul.mubr.bf16.gmra.mrb[0].mxu0 %v43
  %v79 = vpop.f32.mrb[0].mxu0
  %v80 = vadd.f32 %v27, %v79
  %v81 = vpop.f32.mrb[0].mxu0
  %v82 = vpop.f32.mrb[0].mxu0
  %v83 = vadd.f32 %v27, %v82
  %v84 = vpop.f32.mrb[0].mxu0
  %85 = vdwg.mxu0
  %86 = vst [vmem:[%s3] sm:$0xff] %v80
  %87 = vst [vmem:[%s3 + $0x8] sm:$0xff] %v83
  // Predicated region
  $region14: #{lstm_norm_forward.6} parent=0 // pred_check
    _
  $region15: #{lstm_norm_forward.6} parent=0 // pred_check_branch
    %89 = sbr.rel (0) target = $region17
  $region16: #{lstm_norm_forward.6} parent=0 // pred_region
    _
  $region17: #{lstm_norm_forward.6} parent=0 // pred_fallthru
    _
  // Predicated region
  $region18: #{lstm_norm_forward.6} parent=0 // pred_check
    _
  $region19: #{lstm_norm_forward.6} parent=0 // pred_check_branch
    %91 = sbr.rel (0) target = $region21
  $region20: #{lstm_norm_forward.6} parent=0 // pred_region
    _
  $region21: #{lstm_norm_forward.6} parent=0 // pred_fallthru
    _

// kernel: lstm_norm_forward.5
$region0: #{lstm_norm_forward.5}
  #allocation0 [shape = 'u32[]', space=smem, size = 0x4, offset = 0x4, fixed_abs, tag = 'smem constant byte address 0x4 - core index']
  #allocation1 [shape = 'u32[144,128]{1,0:T(1,128)}', space=vmem, size = 0x12000, scoped, tag = 'internal scratch']
  #allocation2 [shape = 'f32[2,32]{1,0:T(2,128)}', space=vmem, size = 0x400, scoped, tag = 'scratch operand']
  #allocation3 [shape = 'f32[2,32]{1,0:T(2,128)}', space=vmem, size = 0x400, scoped, tag = 'scratch operand']
  %s0 = inlined_call_operand.vmem [shape: f32[8,2,128], index: 0, kind: input, shape index: {}]
  %s1 = inlined_call_operand.vmem [shape: bf16[32,128], index: 1, kind: input, shape index: {}]
  %s2 = inlined_call_operand.vmem [shape: f32[8,2,32], index: 2, kind: output, shape index: {}]
  %s3 = sld [smem:[#allocation0]]
  $region22: #{lstm_norm_forward.5} parent=0
    _
  %s5 = ssub.s32 1, %s3
  %s6 = scalar_select 0, %s5, %s3
  // Predicated region
  $region2: #{lstm_norm_forward.5} parent=0 // pred_check
    _
  $region3: #{lstm_norm_forward.5} parent=0 // pred_check_branch
    %8 = sbr.rel (0) target = $region5
  $region4: #{lstm_norm_forward.5} parent=0 // pred_region
    _
  $region5: #{lstm_norm_forward.5} parent=0 // pred_fallthru
    _
  // Predicated region
  $region6: #{lstm_norm_forward.5} parent=0 // pred_check
    _
  $region7: #{lstm_norm_forward.5} parent=0 // pred_check_branch
    %10 = sbr.rel (0) target = $region9
  $region8: #{lstm_norm_forward.5} parent=0 // pred_region
    _
  $region9: #{lstm_norm_forward.5} parent=0 // pred_fallthru
    _
  %p12 = scmp.eq.s32.totalorder 0, 0
  // Predicated region
  $region10: #{lstm_norm_forward.5} parent=0 // pred_check
    %p13 = pneg %p12
  $region11: #{lstm_norm_forward.5} parent=0 // pred_check_branch
    %15 = sbr.rel (%p13) target = $region13
  $region12: #{lstm_norm_forward.5} parent=0 // pred_region
    %vm16 = vcmask 254976
    %17 = vst.msk [vmem:[#allocation2] sm:$0x3] %vm16, 0.0
    %18 = vst.msk [vmem:[#allocation3] sm:$0x3] %vm16, 0.0
  $region13: #{lstm_norm_forward.5} parent=0 // pred_fallthru
    _
  %v19 = vld [vmem:[%s1] sm:$0xf]
  %v20 = vld [vmem:[%s1 + $0x4] sm:$0xf]
  %v21 = vld [vmem:[%s1 + $0x8] sm:$0xf]
  %v22 = vld [vmem:[%s1 + $0xc] sm:$0xf]
  %v23 = vld [vmem:[#allocation2] sm:$0x3]
  %v24 = vld [vmem:[#allocation3] sm:$0x3]
  %v25 = vld [vmem:[%s0] sm:$0x3]
  %v26 = vpack.c.bf16 %v23, %v23
  %v31 = vunpack.c.l.b16 %v19
  %v32 = vunpack.c.l.b16 %v20
  %v33 = vunpack.c.l.b16 %v21
  %v34 = vunpack.c.l.b16 %v22
  %v35 = vpack.c.b16 %v32, %v31
  %v36 = vpack.c.b16 %v34, %v33
  %vm39 = vcmask 261120
  %v41 = vsel %vm39, %v26, 0
  %43 = vmatprep.subr.bf16.mxu0 0
  %44 = vmatpush1.bf16.msra.mxu0 %v35
  %45 = vmatprep.subr.bf16.mxu0 0
  %46 = vmatpush1.bf16.msra.mxu0 %v36
  %47 = vmatprep.subr.bf16.mxu0 0
  %48 = vmatpush1.bf16.msra.mxu0 0
  %49 = vmatprep.subr.bf16.mxu0 0
  %50 = vmatpush1.bf16.msra.mxu0 0
  %51 = vmatprep.subr.bf16.mxu0 0
  %52 = vmatpush1.bf16.msra.mxu0 0
  %53 = vmatprep.subr.bf16.mxu0 0
  %54 = vmatpush1.bf16.msra.mxu0 0
  %55 = vmatprep.subr.bf16.mxu0 0
  %56 = vmatpush1.bf16.msra.mxu0 0
  %57 = vmatprep.subr.bf16.mxu0 0
  %58 = vmatpush1.bf16.msra.mxu0 0
  %59 = vmatprep.subr.bf16.mxu0 0
  %60 = vmatpush1.bf16.msra.mxu0 0
  %61 = vmatprep.subr.bf16.mxu0 0
  %62 = vmatpush1.bf16.msra.mxu0 0
  %63 = vmatprep.subr.bf16.mxu0 0
  %64 = vmatpush1.bf16.msra.mxu0 0
  %65 = vmatprep.subr.bf16.mxu0 0
  %66 = vmatpush1.bf16.msra.mxu0 0
  %67 = vmatprep.subr.bf16.mxu0 0
  %68 = vmatpush1.bf16.msra.mxu0 0
  %69 = vmatprep.subr.bf16.mxu0 0
  %70 = vmatpush1.bf16.msra.mxu0 0
  %71 = vmatprep.subr.bf16.mxu0 0
  %72 = vmatpush1.bf16.msra.mxu0 0
  %73 = vmatprep.subr.bf16.mxu0 0
  %74 = vmatpush1.bf16.msra.mxu0 0
  %75 = vmatprep.mubr.bf16.mxu0 0
  %76 = vmatmul.mubr.bf16.gmra.mrb[0].mxu0 %v41
  %v77 = vpop.f32.mrb[0].mxu0
  %v78 = vadd.f32 0.0, %v77
  %v79 = vpop.f32.mrb[0].mxu0
  %v80 = vpop.f32.mrb[0].mxu0
  %v81 = vpop.f32.mrb[0].mxu0
  %82 = vdwg.mxu0
  %v83 = vadd.f32 %v25, %v78
  %v84 = vxor.u32 %v83, 2147483648
  %v85 = vmul.f32 %v84, 1.442695
  %v86 = vpow.pop %v85
  %v87 = vadd.f32 %v86, 1.0
  %v88 = vrcp.pop %v87
  %v89 = vmul.f32 1.0, %v88
  %v90 = vtanh.pop %v83
  %92 = vrot.lane.b32.xlu0 %v24, 32
  %v93 = vpop.permute.xlu0 %92
  %v95 = vmul.f32 %v89, %v93
  %97 = vrot.lane.b32.xlu0 %v90, 64
  %v98 = vpop.permute.xlu0 %97
  %v100 = vmul.f32 %v89, %v98
  %102 = vrot.lane.b32.xlu0 %v100, 32
  %v103 = vpop.permute.xlu0 %102
  %v105 = vadd.f32 %v95, %v103
  %v106 = vtanh.pop %v105
  %108 = vrot.lane.b32.xlu0 %v106, 64
  %v109 = vpop.permute.xlu0 %108
  %v111 = vmul.f32 %v89, %v109
  %113 = vrot.lane.b32.xlu0 %v111, 32
  %v114 = vpop.permute.xlu0 %113
  %vm116 = vcmask 254976
  %117 = vst.msk [vmem:[%s2] sm:$0x3] %vm116, %v114
  %s118 = scalar_lea.vmem %s0, 2
  %v119 = vld [vmem:[%s118] sm:$0x3]
  %v120 = vpack.c.bf16 %v111, %v111
  %122 = vrot.lane.b32.xlu0 %v120, 32
  %v123 = vpop.permute.xlu0 %122
  %v125 = vsel %vm39, %v123, 0
  %127 = vmatprep.subr.bf16.mxu0 0
  %128 = vmatpush1.bf16.msra.mxu0 %v35
  %129 = vmatprep.subr.bf16.mxu0 0
  %130 = vmatpush1.bf16.msra.mxu0 %v36
  %131 = vmatprep.subr.bf16.mxu0 0
  %132 = vmatpush1.bf16.msra.mxu0 0
  %133 = vmatprep.subr.bf16.mxu0 0
  %134 = vmatpush1.bf16.msra.mxu0 0
  %135 = vmatprep.subr.bf16.mxu0 0
  %136 = vmatpush1.bf16.msra.mxu0 0
  %137 = vmatprep.subr.bf16.mxu0 0
  %138 = vmatpush1.bf16.msra.mxu0 0
  %139 = vmatprep.subr.bf16.mxu0 0
  %140 = vmatpush1.bf16.msra.mxu0 0
  %141 = vmatprep.subr.bf16.mxu0 0
  %142 = vmatpush1.bf16.msra.mxu0 0
  %143 = vmatprep.subr.bf16.mxu0 0
  %144 = vmatpush1.bf16.msra.mxu0 0
  %145 = vmatprep.subr.bf16.mxu0 0
  %146 = vmatpush1.bf16.msra.mxu0 0
  %147 = vmatprep.subr.bf16.mxu0 0
  %148 = vmatpush1.bf16.msra.mxu0 0
  %149 = vmatprep.subr.bf16.mxu0 0
  %150 = vmatpush1.bf16.msra.mxu0 0
  %151 = vmatprep.subr.bf16.mxu0 0
  %152 = vmatpush1.bf16.msra.mxu0 0
  %153 = vmatprep.subr.bf16.mxu0 0
  %154 = vmatpush1.bf16.msra.mxu0 0
  %155 = vmatprep.subr.bf16.mxu0 0
  %156 = vmatpush1.bf16.msra.mxu0 0
  %157 = vmatprep.subr.bf16.mxu0 0
  %158 = vmatpush1.bf16.msra.mxu0 0
  %159 = vmatprep.mubr.bf16.mxu0 0
  %160 = vmatmul.mubr.bf16.gmra.mrb[0].mxu0 %v125
  %v161 = vpop.f32.mrb[0].mxu0
  %v162 = vadd.f32 0.0, %v161
  %v163 = vpop.f32.mrb[0].mxu0
  %v164 = vpop.f32.mrb[0].mxu0
  %v165 = vpop.f32.mrb[0].mxu0
  %166 = vdwg.mxu0
  %v167 = vadd.f32 %v119, %v162
  %v168 = vxor.u32 %v167, 2147483648
  %v169 = vmul.f32 %v168, 1.442695
  %v170 = vpow.pop %v169
  %v171 = vadd.f32 %v170, 1.0
  %v172 = vrcp.pop %v171
  %v173 = vmul.f32 1.0, %v172
  %v174 = vtanh.pop %v167
  %v175 = vmul.f32 %v173, %v105
  %177 = vrot.lane.b32.xlu0 %v174, 64
  %v178 = vpop.permute.xlu0 %177
  %v180 = vmul.f32 %v173, %v178
  %182 = vrot.lane.b32.xlu0 %v180, 32
  %v183 = vpop.permute.xlu0 %182
  %v185 = vadd.f32 %v175, %v183
  %v186 = vtanh.pop %v185
  %188 = vrot.lane.b32.xlu0 %v186, 64
  %v189 = vpop.permute.xlu0 %188
  %v191 = vmul.f32 %v173, %v189
  %193 = vrot.lane.b32.xlu0 %v191, 32
  %v194 = vpop.permute.xlu0 %193
  %s196 = scalar_lea.vmem %s2, 2
  %197 = vst.msk [vmem:[%s196] sm:$0x3] %vm116, %v194
  %s198 = scalar_lea.vmem %s0, 4
  %v199 = vld [vmem:[%s198] sm:$0x3]
  %v200 = vpack.c.bf16 %v191, %v191
  %202 = vrot.lane.b32.xlu0 %v200, 32
  %v203 = vpop.permute.xlu0 %202
  %v205 = vsel %vm39, %v203, 0
  %207 = vmatprep.subr.bf16.mxu0 0
  %208 = vmatpush1.bf16.msra.mxu0 %v35
  %209 = vmatprep.subr.bf16.mxu0 0
  %210 = vmatpush1.bf16.msra.mxu0 %v36
  %211 = vmatprep.subr.bf16.mxu0 0
  %212 = vmatpush1.bf16.msra.mxu0 0
  %213 = vmatprep.subr.bf16.mxu0 0
  %214 = vmatpush1.bf16.msra.mxu0 0
  %215 = vmatprep.subr.bf16.mxu0 0
  %216 = vmatpush1.bf16.msra.mxu0 0
  %217 = vmatprep.subr.bf16.mxu0 0
  %218 = vmatpush1.bf16.msra.mxu0 0
  %219 = vmatprep.subr.bf16.mxu0 0
  %220 = vmatpush1.bf16.msra.mxu0 0
  %221 = vmatprep.subr.bf16.mxu0 0
  %222 = vmatpush1.bf16.msra.mxu0 0
  %223 = vmatprep.subr.bf16.mxu0 0
  %224 = vmatpush1.bf16.msra.mxu0 0
  %225 = vmatprep.subr.bf16.mxu0 0
  %226 = vmatpush1.bf16.msra.mxu0 0
  %227 = vmatprep.subr.bf16.mxu0 0
  %228 = vmatpush1.bf16.msra.mxu0 0
  %229 = vmatprep.subr.bf16.mxu0 0
  %230 = vmatpush1.bf16.msra.mxu0 0
  %231 = vmatprep.subr.bf16.mxu0 0
  %232 = vmatpush1.bf16.msra.mxu0 0
  %233 = vmatprep.subr.bf16.mxu0 0
  %234 = vmatpush1.bf16.msra.mxu0 0
  %235 = vmatprep.subr.bf16.mxu0 0
  %236 = vmatpush1.bf16.msra.mxu0 0
  %237 = vmatprep.subr.bf16.mxu0 0
  %238 = vmatpush1.bf16.msra.mxu0 0
  %239 = vmatprep.mubr.bf16.mxu0 0
  %240 = vmatmul.mubr.bf16.gmra.mrb[0].mxu0 %v205
  %v241 = vpop.f32.mrb[0].mxu0
  %v242 = vadd.f32 0.0, %v241
  %v243 = vpop.f32.mrb[0].mxu0
  %v244 = vpop.f32.mrb[0].mxu0
  %v245 = vpop.f32.mrb[0].mxu0
  %246 = vdwg.mxu0
  %v247 = vadd.f32 %v199, %v242
  %v248 = vxor.u32 %v247, 2147483648
  %v249 = vmul.f32 %v248, 1.442695
  %v250 = vpow.pop %v249
  %v251 = vadd.f32 %v250, 1.0
  %v252 = vrcp.pop %v251
  %v253 = vmul.f32 1.0, %v252
  %v254 = vtanh.pop %v247
  %v255 = vmul.f32 %v253, %v185
  %257 = vrot.lane.b32.xlu0 %v254, 64
  %v258 = vpop.permute.xlu0 %257
  %v260 = vmul.f32 %v253, %v258
  %262 = vrot.lane.b32.xlu0 %v260, 32
  %v263 = vpop.permute.xlu0 %262
  %v265 = vadd.f32 %v255, %v263
  %v266 = vtanh.pop %v265
  %268 = vrot.lane.b32.xlu0 %v266, 64
  %v269 = vpop.permute.xlu0 %268
  %v271 = vmul.f32 %v253, %v269
  %273 = vrot.lane.b32.xlu0 %v271, 32
  %v274 = vpop.permute.xlu0 %273
  %s276 = scalar_lea.vmem %s2, 4
  %277 = vst.msk [vmem:[%s276] sm:$0x3] %vm116, %v274
  %s278 = scalar_lea.vmem %s0, 6
  %v279 = vld [vmem:[%s278] sm:$0x3]
  %v280 = vpack.c.bf16 %v271, %v271
  %282 = vrot.lane.b32.xlu0 %v280, 32
  %v283 = vpop.permute.xlu0 %282
  %v285 = vsel %vm39, %v283, 0
  %287 = vmatprep.subr.bf16.mxu0 0
  %288 = vmatpush1.bf16.msra.mxu0 %v35
  %289 = vmatprep.subr.bf16.mxu0 0
  %290 = vmatpush1.bf16.msra.mxu0 %v36
  %291 = vmatprep.subr.bf16.mxu0 0
  %292 = vmatpush1.bf16.msra.mxu0 0
  %293 = vmatprep.subr.bf16.mxu0 0
  %294 = vmatpush1.bf16.msra.mxu0 0
  %295 = vmatprep.subr.bf16.mxu0 0
  %296 = vmatpush1.bf16.msra.mxu0 0
  %297 = vmatprep.subr.bf16.mxu0 0
  %298 = vmatpush1.bf16.msra.mxu0 0
  %299 = vmatprep.subr.bf16.mxu0 0
  %300 = vmatpush1.bf16.msra.mxu0 0
  %301 = vmatprep.subr.bf16.mxu0 0
  %302 = vmatpush1.bf16.msra.mxu0 0
  %303 = vmatprep.subr.bf16.mxu0 0
  %304 = vmatpush1.bf16.msra.mxu0 0
  %305 = vmatprep.subr.bf16.mxu0 0
  %306 = vmatpush1.bf16.msra.mxu0 0
  %307 = vmatprep.subr.bf16.mxu0 0
  %308 = vmatpush1.bf16.msra.mxu0 0
  %309 = vmatprep.subr.bf16.mxu0 0
  %310 = vmatpush1.bf16.msra.mxu0 0
  %311 = vmatprep.subr.bf16.mxu0 0
  %312 = vmatpush1.bf16.msra.mxu0 0
  %313 = vmatprep.subr.bf16.mxu0 0
  %314 = vmatpush1.bf16.msra.mxu0 0
  %315 = vmatprep.subr.bf16.mxu0 0
  %316 = vmatpush1.bf16.msra.mxu0 0
  %317 = vmatprep.subr.bf16.mxu0 0
  %318 = vmatpush1.bf16.msra.mxu0 0
  %319 = vmatprep.mubr.bf16.mxu0 0
  %320 = vmatmul.mubr.bf16.gmra.mrb[0].mxu0 %v285
  %v321 = vpop.f32.mrb[0].mxu0
  %v322 = vadd.f32 0.0, %v321
  %v323 = vpop.f32.mrb[0].mxu0
  %v324 = vpop.f32.mrb[0].mxu0
  %v325 = vpop.f32.mrb[0].mxu0
  %326 = vdwg.mxu0
  %v327 = vadd.f32 %v279, %v322
  %v328 = vxor.u32 %v327, 2147483648
  %v329 = vmul.f32 %v328, 1.442695
  %v330 = vpow.pop %v329
  %v331 = vadd.f32 %v330, 1.0
  %v332 = vrcp.pop %v331
  %v333 = vmul.f32 1.0, %v332
  %v334 = vtanh.pop %v327
  %v335 = vmul.f32 %v333, %v265
  %337 = vrot.lane.b32.xlu0 %v334, 64
  %v338 = vpop.permute.xlu0 %337
  %v340 = vmul.f32 %v333, %v338
  %342 = vrot.lane.b32.xlu0 %v340, 32
  %v343 = vpop.permute.xlu0 %342
  %v345 = vadd.f32 %v335, %v343
  %v346 = vtanh.pop %v345
  %348 = vrot.lane.b32.xlu0 %v346, 64
  %v349 = vpop.permute.xlu0 %348
  %v351 = vmul.f32 %v333, %v349
  %353 = vrot.lane.b32.xlu0 %v351, 32
  %v354 = vpop.permute.xlu0 %353
  %s356 = scalar_lea.vmem %s2, 6
  %357 = vst.msk [vmem:[%s356] sm:$0x3] %vm116, %v354
  %s358 = scalar_lea.vmem %s0, 8
  %v359 = vld [vmem:[%s358] sm:$0x3]
  %v360 = vpack.c.bf16 %v351, %v351
  %362 = vrot.lane.b32.xlu0 %v360, 32
  %v363 = vpop.permute.xlu0 %362
  %v365 = vsel %vm39, %v363, 0
  %367 = vmatprep.subr.bf16.mxu0 0
  %368 = vmatpush1.bf16.msra.mxu0 %v35
  %369 = vmatprep.subr.bf16.mxu0 0
  %370 = vmatpush1.bf16.msra.mxu0 %v36
  %371 = vmatprep.subr.bf16.mxu0 0
  %372 = vmatpush1.bf16.msra.mxu0 0
  %373 = vmatprep.subr.bf16.mxu0 0
  %374 = vmatpush1.bf16.msra.mxu0 0
  %375 = vmatprep.subr.bf16.mxu0 0
  %376 = vmatpush1.bf16.msra.mxu0 0
  %377 = vmatprep.subr.bf16.mxu0 0
  %378 = vmatpush1.bf16.msra.mxu0 0
  %379 = vmatprep.subr.bf16.mxu0 0
  %380 = vmatpush1.bf16.msra.mxu0 0
  %381 = vmatprep.subr.bf16.mxu0 0
  %382 = vmatpush1.bf16.msra.mxu0 0
  %383 = vmatprep.subr.bf16.mxu0 0
  %384 = vmatpush1.bf16.msra.mxu0 0
  %385 = vmatprep.subr.bf16.mxu0 0
  %386 = vmatpush1.bf16.msra.mxu0 0
  %387 = vmatprep.subr.bf16.mxu0 0
  %388 = vmatpush1.bf16.msra.mxu0 0
  %389 = vmatprep.subr.bf16.mxu0 0
  %390 = vmatpush1.bf16.msra.mxu0 0
  %391 = vmatprep.subr.bf16.mxu0 0
  %392 = vmatpush1.bf16.msra.mxu0 0
  %393 = vmatprep.subr.bf16.mxu0 0
  %394 = vmatpush1.bf16.msra.mxu0 0
  %395 = vmatprep.subr.bf16.mxu0 0
  %396 = vmatpush1.bf16.msra.mxu0 0
  %397 = vmatprep.subr.bf16.mxu0 0
  %398 = vmatpush1.bf16.msra.mxu0 0
  %399 = vmatprep.mubr.bf16.mxu0 0
  %400 = vmatmul.mubr.bf16.gmra.mrb[0].mxu0 %v365
  %v401 = vpop.f32.mrb[0].mxu0
  %v402 = vadd.f32 0.0, %v401
  %v403 = vpop.f32.mrb[0].mxu0
  %v404 = vpop.f32.mrb[0].mxu0
  %v405 = vpop.f32.mrb[0].mxu0
  %406 = vdwg.mxu0
  %v407 = vadd.f32 %v359, %v402
  %v408 = vxor.u32 %v407, 2147483648
  %v409 = vmul.f32 %v408, 1.442695
  %v410 = vpow.pop %v409
  %v411 = vadd.f32 %v410, 1.0
  %v412 = vrcp.pop %v411
  %v413 = vmul.f32 1.0, %v412
  %v414 = vtanh.pop %v407
  %v415 = vmul.f32 %v413, %v345
  %417 = vrot.lane.b32.xlu0 %v414, 64
  %v418 = vpop.permute.xlu0 %417
  %v420 = vmul.f32 %v413, %v418
  %422 = vrot.lane.b32.xlu0 %v420, 32
  %v423 = vpop.permute.xlu0 %422
  %v425 = vadd.f32 %v415, %v423
  %v426 = vtanh.pop %v425
  %428 = vrot.lane.b32.xlu0 %v426, 64
  %v429 = vpop.permute.xlu0 %428
  %v431 = vmul.f32 %v413, %v429
  %433 = vrot.lane.b32.xlu0 %v431, 32
  %v434 = vpop.permute.xlu0 %433
  %s436 = scalar_lea.vmem %s2, 8
  %437 = vst.msk [vmem:[%s436] sm:$0x3] %vm116, %v434
  %s438 = scalar_lea.vmem %s0, 10
  %v439 = vld [vmem:[%s438] sm:$0x3]
  %v440 = vpack.c.bf16 %v431, %v431
  %442 = vrot.lane.b32.xlu0 %v440, 32
  %v443 = vpop.permute.xlu0 %442
  %v445 = vsel %vm39, %v443, 0
  %447 = vmatprep.subr.bf16.mxu0 0
  %448 = vmatpush1.bf16.msra.mxu0 %v35
  %449 = vmatprep.subr.bf16.mxu0 0
  %450 = vmatpush1.bf16.msra.mxu0 %v36
  %451 = vmatprep.subr.bf16.mxu0 0
  %452 = vmatpush1.bf16.msra.mxu0 0
  %453 = vmatprep.subr.bf16.mxu0 0
  %454 = vmatpush1.bf16.msra.mxu0 0
  %455 = vmatprep.subr.bf16.mxu0 0
  %456 = vmatpush1.bf16.msra.mxu0 0
  %457 = vmatprep.subr.bf16.mxu0 0
  %458 = vmatpush1.bf16.msra.mxu0 0
  %459 = vmatprep.subr.bf16.mxu0 0
  %460 = vmatpush1.bf16.msra.mxu0 0
  %461 = vmatprep.subr.bf16.mxu0 0
  %462 = vmatpush1.bf16.msra.mxu0 0
  %463 = vmatprep.subr.bf16.mxu0 0
  %464 = vmatpush1.bf16.msra.mxu0 0
  %465 = vmatprep.subr.bf16.mxu0 0
  %466 = vmatpush1.bf16.msra.mxu0 0
  %467 = vmatprep.subr.bf16.mxu0 0
  %468 = vmatpush1.bf16.msra.mxu0 0
  %469 = vmatprep.subr.bf16.mxu0 0
  %470 = vmatpush1.bf16.msra.mxu0 0
  %471 = vmatprep.subr.bf16.mxu0 0
  %472 = vmatpush1.bf16.msra.mxu0 0
  %473 = vmatprep.subr.bf16.mxu0 0
  %474 = vmatpush1.bf16.msra.mxu0 0
  %475 = vmatprep.subr.bf16.mxu0 0
  %476 = vmatpush1.bf16.msra.mxu0 0
  %477 = vmatprep.subr.bf16.mxu0 0
  %478 = vmatpush1.bf16.msra.mxu0 0
  %479 = vmatprep.mubr.bf16.mxu0 0
  %480 = vmatmul.mubr.bf16.gmra.mrb[0].mxu0 %v445
  %v481 = vpop.f32.mrb[0].mxu0
  %v482 = vadd.f32 0.0, %v481
  %v483 = vpop.f32.mrb[0].mxu0
  %v484 = vpop.f32.mrb[0].mxu0
  %v485 = vpop.f32.mrb[0].mxu0
  %486 = vdwg.mxu0
  %v487 = vadd.f32 %v439, %v482
  %v488 = vxor.u32 %v487, 2147483648
  %v489 = vmul.f32 %v488, 1.442695
  %v490 = vpow.pop %v489
  %v491 = vadd.f32 %v490, 1.0
  %v492 = vrcp.pop %v491
  %v493 = vmul.f32 1.0, %v492
  %v494 = vtanh.pop %v487
  %v495 = vmul.f32 %v493, %v425
  %497 = vrot.lane.b32.xlu0 %v494, 64
  %v498 = vpop.permute.xlu0 %497
  %v500 = vmul.f32 %v493, %v498
  %502 = vrot.lane.b32.xlu0 %v500, 32
  %v503 = vpop.permute.xlu0 %502
  %v505 = vadd.f32 %v495, %v503
  %v506 = vtanh.pop %v505
  %508 = vrot.lane.b32.xlu0 %v506, 64
  %v509 = vpop.permute.xlu0 %508
  %v511 = vmul.f32 %v493, %v509
  %513 = vrot.lane.b32.xlu0 %v511, 32
  %v514 = vpop.permute.xlu0 %513
  %s516 = scalar_lea.vmem %s2, 10
  %517 = vst.msk [vmem:[%s516] sm:$0x3] %vm116, %v514
  %s518 = scalar_lea.vmem %s0, 12
  %v519 = vld [vmem:[%s518] sm:$0x3]
  %v520 = vpack.c.bf16 %v511, %v511
  %522 = vrot.lane.b32.xlu0 %v520, 32
  %v523 = vpop.permute.xlu0 %522
  %v525 = vsel %vm39, %v523, 0
  %527 = vmatprep.subr.bf16.mxu0 0
  %528 = vmatpush1.bf16.msra.mxu0 %v35
  %529 = vmatprep.subr.bf16.mxu0 0
  %530 = vmatpush1.bf16.msra.mxu0 %v36
  %531 = vmatprep.subr.bf16.mxu0 0
  %532 = vmatpush1.bf16.msra.mxu0 0
  %533 = vmatprep.subr.bf16.mxu0 0
  %534 = vmatpush1.bf16.msra.mxu0 0
  %535 = vmatprep.subr.bf16.mxu0 0
  %536 = vmatpush1.bf16.msra.mxu0 0
  %537 = vmatprep.subr.bf16.mxu0 0
  %538 = vmatpush1.bf16.msra.mxu0 0
  %539 = vmatprep.subr.bf16.mxu0 0
  %540 = vmatpush1.bf16.msra.mxu0 0
  %541 = vmatprep.subr.bf16.mxu0 0
  %542 = vmatpush1.bf16.msra.mxu0 0
  %543 = vmatprep.subr.bf16.mxu0 0
  %544 = vmatpush1.bf16.msra.mxu0 0
  %545 = vmatprep.subr.bf16.mxu0 0
  %546 = vmatpush1.bf16.msra.mxu0 0
  %547 = vmatprep.subr.bf16.mxu0 0
  %548 = vmatpush1.bf16.msra.mxu0 0
  %549 = vmatprep.subr.bf16.mxu0 0
  %550 = vmatpush1.bf16.msra.mxu0 0
  %551 = vmatprep.subr.bf16.mxu0 0
  %552 = vmatpush1.bf16.msra.mxu0 0
  %553 = vmatprep.subr.bf16.mxu0 0
  %554 = vmatpush1.bf16.msra.mxu0 0
  %555 = vmatprep.subr.bf16.mxu0 0
  %556 = vmatpush1.bf16.msra.mxu0 0
  %557 = vmatprep.subr.bf16.mxu0 0
  %558 = vmatpush1.bf16.msra.mxu0 0
  %559 = vmatprep.mubr.bf16.mxu0 0
  %560 = vmatmul.mubr.bf16.gmra.mrb[0].mxu0 %v525
  %v561 = vpop.f32.mrb[0].mxu0
  %v562 = vadd.f32 0.0, %v561
  %v563 = vpop.f32.mrb[0].mxu0
  %v564 = vpop.f32.mrb[0].mxu0
  %v565 = vpop.f32.mrb[0].mxu0
  %566 = vdwg.mxu0
  %v567 = vadd.f32 %v519, %v562
  %v568 = vxor.u32 %v567, 2147483648
  %v569 = vmul.f32 %v568, 1.442695
  %v570 = vpow.pop %v569
  %v571 = vadd.f32 %v570, 1.0
  %v572 = vrcp.pop %v571
  %v573 = vmul.f32 1.0, %v572
  %v574 = vtanh.pop %v567
  %v575 = vmul.f32 %v573, %v505
  %577 = vrot.lane.b32.xlu0 %v574, 64
  %v578 = vpop.permute.xlu0 %577
  %v580 = vmul.f32 %v573, %v578
  %582 = vrot.lane.b32.xlu0 %v580, 32
  %v583 = vpop.permute.xlu0 %582
  %v585 = vadd.f32 %v575, %v583
  %v586 = vtanh.pop %v585
  %588 = vrot.lane.b32.xlu0 %v586, 64
  %v589 = vpop.permute.xlu0 %588
  %v591 = vmul.f32 %v573, %v589
  %593 = vrot.lane.b32.xlu0 %v591, 32
  %v594 = vpop.permute.xlu0 %593
  %s596 = scalar_lea.vmem %s2, 12
  %597 = vst.msk [vmem:[%s596] sm:$0x3] %vm116, %v594
  %s598 = scalar_lea.vmem %s0, 14
  %v599 = vld [vmem:[%s598] sm:$0x3]
  %v600 = vpack.c.bf16 %v591, %v591
  %602 = vrot.lane.b32.xlu0 %v600, 32
  %v603 = vpop.permute.xlu0 %602
  %v605 = vsel %vm39, %v603, 0
  %607 = vmatprep.subr.bf16.mxu0 0
  %608 = vmatpush1.bf16.msra.mxu0 %v35
  %609 = vmatprep.subr.bf16.mxu0 0
  %610 = vmatpush1.bf16.msra.mxu0 %v36
  %611 = vmatprep.subr.bf16.mxu0 0
  %612 = vmatpush1.bf16.msra.mxu0 0
  %613 = vmatprep.subr.bf16.mxu0 0
  %614 = vmatpush1.bf16.msra.mxu0 0
  %615 = vmatprep.subr.bf16.mxu0 0
  %616 = vmatpush1.bf16.msra.mxu0 0
  %617 = vmatprep.subr.bf16.mxu0 0
  %618 = vmatpush1.bf16.msra.mxu0 0
  %619 = vmatprep.subr.bf16.mxu0 0
  %620 = vmatpush1.bf16.msra.mxu0 0
  %621 = vmatprep.subr.bf16.mxu0 0
  %622 = vmatpush1.bf16.msra.mxu0 0
  %623 = vmatprep.subr.bf16.mxu0 0
  %624 = vmatpush1.bf16.msra.mxu0 0
  %625 = vmatprep.subr.bf16.mxu0 0
  %626 = vmatpush1.bf16.msra.mxu0 0
  %627 = vmatprep.subr.bf16.mxu0 0
  %628 = vmatpush1.bf16.msra.mxu0 0
  %629 = vmatprep.subr.bf16.mxu0 0
  %630 = vmatpush1.bf16.msra.mxu0 0
  %631 = vmatprep.subr.bf16.mxu0 0
  %632 = vmatpush1.bf16.msra.mxu0 0
  %633 = vmatprep.subr.bf16.mxu0 0
  %634 = vmatpush1.bf16.msra.mxu0 0
  %635 = vmatprep.subr.bf16.mxu0 0
  %636 = vmatpush1.bf16.msra.mxu0 0
  %637 = vmatprep.subr.bf16.mxu0 0
  %638 = vmatpush1.bf16.msra.mxu0 0
  %639 = vmatprep.mubr.bf16.mxu0 0
  %640 = vmatmul.mubr.bf16.gmra.mrb[0].mxu0 %v605
  %v641 = vpop.f32.mrb[0].mxu0
  %v642 = vadd.f32 0.0, %v641
  %v643 = vpop.f32.mrb[0].mxu0
  %v644 = vpop.f32.mrb[0].mxu0
  %v645 = vpop.f32.mrb[0].mxu0
  %646 = vdwg.mxu0
  %v647 = vadd.f32 %v599, %v642
  %v648 = vxor.u32 %v647, 2147483648
  %v649 = vmul.f32 %v648, 1.442695
  %v650 = vpow.pop %v649
  %v651 = vadd.f32 %v650, 1.0
  %v652 = vrcp.pop %v651
  %v653 = vmul.f32 1.0, %v652
  %v654 = vtanh.pop %v647
  %v655 = vmul.f32 %v653, %v585
  %657 = vrot.lane.b32.xlu0 %v654, 64
  %v658 = vpop.permute.xlu0 %657
  %v660 = vmul.f32 %v653, %v658
  %662 = vrot.lane.b32.xlu0 %v660, 32
  %v663 = vpop.permute.xlu0 %662
  %v665 = vadd.f32 %v655, %v663
  %v666 = vtanh.pop %v665
  %668 = vrot.lane.b32.xlu0 %v666, 64
  %v669 = vpop.permute.xlu0 %668
  %v671 = vmul.f32 %v653, %v669
  %673 = vrot.lane.b32.xlu0 %v671, 32
  %v674 = vpop.permute.xlu0 %673
  %s676 = scalar_lea.vmem %s2, 14
  %677 = vst.msk [vmem:[%s676] sm:$0x3] %vm116, %v674
  %678 = vst.msk [vmem:[#allocation2] sm:$0x3] %vm116, %v674
  %680 = vrot.lane.b32.xlu0 %v665, 96
  %v681 = vpop.permute.xlu0 %680
  %683 = vst.msk [vmem:[#allocation3] sm:$0x3] %vm116, %v681
  // Predicated region
  $region14: #{lstm_norm_forward.5} parent=0 // pred_check
    _
  $region15: #{lstm_norm_forward.5} parent=0 // pred_check_branch
    %685 = sbr.rel (0) target = $region17
  $region16: #{lstm_norm_forward.5} parent=0 // pred_region
    _
  $region17: #{lstm_norm_forward.5} parent=0 // pred_fallthru
    _
  // Predicated region
  $region18: #{lstm_norm_forward.5} parent=0 // pred_check
    _
  $region19: #{lstm_norm_forward.5} parent=0 // pred_check_branch
    %687 = sbr.rel (0) target = $region21
  $region20: #{lstm_norm_forward.5} parent=0 // pred_region
    _
  $region21: #{lstm_norm_forward.5} parent=0 // pred_fallthru
    _

// kernel: lstm_norm_forward.7
$region0: #{lstm_norm_forward.7}
  #allocation0 [shape = 'u32[]', space=smem, size = 0x4, offset = 0x4, fixed_abs, tag = 'smem constant byte address 0x4 - core index']
  #allocation1 [shape = 'u32[144,128]{1,0:T(1,128)}', space=vmem, size = 0x12000, scoped, tag = 'internal scratch']
  #allocation2 [shape = 'f32[2,32]{1,0:T(2,128)}', space=vmem, size = 0x400, scoped, tag = 'scratch operand']
  #allocation3 [shape = 'f32[2,32]{1,0:T(2,128)}', space=vmem, size = 0x400, scoped, tag = 'scratch operand']
  %s0 = inlined_call_operand.vmem [shape: f32[8,2,128], index: 0, kind: input, shape index: {}]
  %s1 = inlined_call_operand.vmem [shape: bf16[32,128], index: 1, kind: input, shape index: {}]
  %s2 = inlined_call_operand.vmem [shape: f32[32,4], index: 2, kind: input, shape index: {}]
  %s3 = inlined_call_operand.vmem [shape: f32[1,4], index: 3, kind: input, shape index: {}]
  %s4 = inlined_call_operand.hbm [shape: f32[2,4], index: 4, kind: output, shape index: {}]
  %s5 = sld [smem:[#allocation0]]
  $region34: #{lstm_norm_forward.7} parent=0
    _
  %s7 = ssub.s32 1, %s5
  %s8 = scalar_select 0, %s7, %s5
  $region1: #{lstm_norm_forward.7} parent=0
    #allocation4 [shape = 'u8[1024]{0}', space=vmem, size = 0x400, scoped, tag = 'output window, operand 0, single buffered']
    #allocation5 [shape = 's32[1]{0}', space=sflag, size = 0x4, scoped, tag = 'scoped memory for lstm_norm_forward.7']
    %9 = vsyncpa [#allocation5], 0
    // Predicated region
    $region2: #{lstm_norm_forward.7} parent=1 // pred_check
      _
    $region3: #{lstm_norm_forward.7} parent=1 // pred_check_branch
      %11 = sbr.rel (0) target = $region5
    $region4: #{lstm_norm_forward.7} parent=1 // pred_region
      _
    $region5: #{lstm_norm_forward.7} parent=1 // pred_fallthru
      _
    // Predicated region
    $region6: #{lstm_norm_forward.7} parent=1 // pred_check
      _
    $region7: #{lstm_norm_forward.7} parent=1 // pred_check_branch
      %13 = sbr.rel (0) target = $region9
    $region8: #{lstm_norm_forward.7} parent=1 // pred_region
      _
    $region9: #{lstm_norm_forward.7} parent=1 // pred_fallthru
      _
    // Predicated region
    $region10: #{lstm_norm_forward.7} parent=1 // pred_check
      _
    $region11: #{lstm_norm_forward.7} parent=1 // pred_check_branch
      %15 = sbr.rel (0) target = $region13
    $region12: #{lstm_norm_forward.7} parent=1 // pred_region
      _
    $region13: #{lstm_norm_forward.7} parent=1 // pred_fallthru
      _
    // Predicated region
    $region14: #{lstm_norm_forward.7} parent=1 // pred_check
      _
    $region15: #{lstm_norm_forward.7} parent=1 // pred_check_branch
      %17 = sbr.rel (0) target = $region17
    $region16: #{lstm_norm_forward.7} parent=1 // pred_region
      _
    $region17: #{lstm_norm_forward.7} parent=1 // pred_fallthru
      _
    %p19 = scmp.eq.s32.totalorder 0, 0
    // Predicated region
    $region18: #{lstm_norm_forward.7} parent=1 // pred_check
      %p20 = pneg %p19
    $region19: #{lstm_norm_forward.7} parent=1 // pred_check_branch
      %22 = sbr.rel (%p20) target = $region21
    $region20: #{lstm_norm_forward.7} parent=1 // pred_region
      %vm23 = vcmask 254976
      %24 = vst.msk [vmem:[#allocation2] sm:$0x3] %vm23, 0.0
      %25 = vst.msk [vmem:[#allocation3] sm:$0x3] %vm23, 0.0
    $region21: #{lstm_norm_forward.7} parent=1 // pred_fallthru
      _
    %v26 = vld [vmem:[%s1] sm:$0xf]
    %v27 = vld [vmem:[%s1 + $0x4] sm:$0xf]
    %v28 = vld [vmem:[%s1 + $0x8] sm:$0xf]
    %v29 = vld [vmem:[%s1 + $0xc] sm:$0xf]
    %v30 = vld [vmem:[#allocation2] sm:$0x3]
    %v31 = vld [vmem:[#allocation3] sm:$0x3]
    %v32 = vld [vmem:[%s0] sm:$0x3]
    %v33 = vpack.c.bf16 %v30, %v30
    %v38 = vunpack.c.l.b16 %v26
    %v39 = vunpack.c.l.b16 %v27
    %v40 = vunpack.c.l.b16 %v28
    %v41 = vunpack.c.l.b16 %v29
    %v42 = vpack.c.b16 %v39, %v38
    %v43 = vpack.c.b16 %v41, %v40
    %vm46 = vcmask 261120
    %v48 = vsel %vm46, %v33, 0
    %50 = vmatprep.subr.bf16.mxu0 0
    %51 = vmatpush1.bf16.msra.mxu0 %v42
    %52 = vmatprep.subr.bf16.mxu0 0
    %53 = vmatpush1.bf16.msra.mxu0 %v43
    %54 = vmatprep.subr.bf16.mxu0 0
    %55 = vmatpush1.bf16.msra.mxu0 0
    %56 = vmatprep.subr.bf16.mxu0 0
    %57 = vmatpush1.bf16.msra.mxu0 0
    %58 = vmatprep.subr.bf16.mxu0 0
    %59 = vmatpush1.bf16.msra.mxu0 0
    %60 = vmatprep.subr.bf16.mxu0 0
    %61 = vmatpush1.bf16.msra.mxu0 0
    %62 = vmatprep.subr.bf16.mxu0 0
    %63 = vmatpush1.bf16.msra.mxu0 0
    %64 = vmatprep.subr.bf16.mxu0 0
    %65 = vmatpush1.bf16.msra.mxu0 0
    %66 = vmatprep.subr.bf16.mxu0 0
    %67 = vmatpush1.bf16.msra.mxu0 0
    %68 = vmatprep.subr.bf16.mxu0 0
    %69 = vmatpush1.bf16.msra.mxu0 0
    %70 = vmatprep.subr.bf16.mxu0 0
    %71 = vmatpush1.bf16.msra.mxu0 0
    %72 = vmatprep.subr.bf16.mxu0 0
    %73 = vmatpush1.bf16.msra.mxu0 0
    %74 = vmatprep.subr.bf16.mxu0 0
    %75 = vmatpush1.bf16.msra.mxu0 0
    %76 = vmatprep.subr.bf16.mxu0 0
    %77 = vmatpush1.bf16.msra.mxu0 0
    %78 = vmatprep.subr.bf16.mxu0 0
    %79 = vmatpush1.bf16.msra.mxu0 0
    %80 = vmatprep.subr.bf16.mxu0 0
    %81 = vmatpush1.bf16.msra.mxu0 0
    %82 = vmatprep.mubr.bf16.mxu0 0
    %83 = vmatmul.mubr.bf16.gmra.mrb[0].mxu0 %v48
    %v84 = vpop.f32.mrb[0].mxu0
    %v85 = vadd.f32 0.0, %v84
    %v86 = vpop.f32.mrb[0].mxu0
    %v87 = vpop.f32.mrb[0].mxu0
    %v88 = vpop.f32.mrb[0].mxu0
    %89 = vdwg.mxu0
    %v90 = vadd.f32 %v32, %v85
    %v91 = vxor.u32 %v90, 2147483648
    %v92 = vmul.f32 %v91, 1.442695
    %v93 = vpow.pop %v92
    %v94 = vadd.f32 %v93, 1.0
    %v95 = vrcp.pop %v94
    %v96 = vmul.f32 1.0, %v95
    %v97 = vtanh.pop %v90
    %99 = vrot.lane.b32.xlu0 %v31, 32
    %v100 = vpop.permute.xlu0 %99
    %v102 = vmul.f32 %v96, %v100
    %104 = vrot.lane.b32.xlu0 %v97, 64
    %v105 = vpop.permute.xlu0 %104
    %v107 = vmul.f32 %v96, %v105
    %109 = vrot.lane.b32.xlu0 %v107, 32
    %v110 = vpop.permute.xlu0 %109
    %v112 = vadd.f32 %v102, %v110
    %v113 = vtanh.pop %v112
    %115 = vrot.lane.b32.xlu0 %v113, 64
    %v116 = vpop.permute.xlu0 %115
    %v118 = vmul.f32 %v96, %v116
    %s119 = scalar_lea.vmem %s0, 2
    %v120 = vld [vmem:[%s119] sm:$0x3]
    %v121 = vpack.c.bf16 %v118, %v118
    %123 = vrot.lane.b32.xlu0 %v121, 32
    %v124 = vpop.permute.xlu0 %123
    %v126 = vsel %vm46, %v124, 0
    %128 = vmatprep.subr.bf16.mxu0 0
    %129 = vmatpush1.bf16.msra.mxu0 %v42
    %130 = vmatprep.subr.bf16.mxu0 0
    %131 = vmatpush1.bf16.msra.mxu0 %v43
    %132 = vmatprep.subr.bf16.mxu0 0
    %133 = vmatpush1.bf16.msra.mxu0 0
    %134 = vmatprep.subr.bf16.mxu0 0
    %135 = vmatpush1.bf16.msra.mxu0 0
    %136 = vmatprep.subr.bf16.mxu0 0
    %137 = vmatpush1.bf16.msra.mxu0 0
    %138 = vmatprep.subr.bf16.mxu0 0
    %139 = vmatpush1.bf16.msra.mxu0 0
    %140 = vmatprep.subr.bf16.mxu0 0
    %141 = vmatpush1.bf16.msra.mxu0 0
    %142 = vmatprep.subr.bf16.mxu0 0
    %143 = vmatpush1.bf16.msra.mxu0 0
    %144 = vmatprep.subr.bf16.mxu0 0
    %145 = vmatpush1.bf16.msra.mxu0 0
    %146 = vmatprep.subr.bf16.mxu0 0
    %147 = vmatpush1.bf16.msra.mxu0 0
    %148 = vmatprep.subr.bf16.mxu0 0
    %149 = vmatpush1.bf16.msra.mxu0 0
    %150 = vmatprep.subr.bf16.mxu0 0
    %151 = vmatpush1.bf16.msra.mxu0 0
    %152 = vmatprep.subr.bf16.mxu0 0
    %153 = vmatpush1.bf16.msra.mxu0 0
    %154 = vmatprep.subr.bf16.mxu0 0
    %155 = vmatpush1.bf16.msra.mxu0 0
    %156 = vmatprep.subr.bf16.mxu0 0
    %157 = vmatpush1.bf16.msra.mxu0 0
    %158 = vmatprep.subr.bf16.mxu0 0
    %159 = vmatpush1.bf16.msra.mxu0 0
    %160 = vmatprep.mubr.bf16.mxu0 0
    %161 = vmatmul.mubr.bf16.gmra.mrb[0].mxu0 %v126
    %v162 = vpop.f32.mrb[0].mxu0
    %v163 = vadd.f32 0.0, %v162
    %v164 = vpop.f32.mrb[0].mxu0
    %v165 = vpop.f32.mrb[0].mxu0
    %v166 = vpop.f32.mrb[0].mxu0
    %167 = vdwg.mxu0
    %v168 = vadd.f32 %v120, %v163
    %v169 = vxor.u32 %v168, 2147483648
    %v170 = vmul.f32 %v169, 1.442695
    %v171 = vpow.pop %v170
    %v172 = vadd.f32 %v171, 1.0
    %v173 = vrcp.pop %v172
    %v174 = vmul.f32 1.0, %v173
    %v175 = vtanh.pop %v168
    %v176 = vmul.f32 %v174, %v112
    %178 = vrot.lane.b32.xlu0 %v175, 64
    %v179 = vpop.permute.xlu0 %178
    %v181 = vmul.f32 %v174, %v179
    %183 = vrot.lane.b32.xlu0 %v181, 32
    %v184 = vpop.permute.xlu0 %183
    %v186 = vadd.f32 %v176, %v184
    %v187 = vtanh.pop %v186
    %189 = vrot.lane.b32.xlu0 %v187, 64
    %v190 = vpop.permute.xlu0 %189
    %v192 = vmul.f32 %v174, %v190
    %s193 = scalar_lea.vmem %s0, 4
    %v194 = vld [vmem:[%s193] sm:$0x3]
    %v195 = vpack.c.bf16 %v192, %v192
    %197 = vrot.lane.b32.xlu0 %v195, 32
    %v198 = vpop.permute.xlu0 %197
    %v200 = vsel %vm46, %v198, 0
    %202 = vmatprep.subr.bf16.mxu0 0
    %203 = vmatpush1.bf16.msra.mxu0 %v42
    %204 = vmatprep.subr.bf16.mxu0 0
    %205 = vmatpush1.bf16.msra.mxu0 %v43
    %206 = vmatprep.subr.bf16.mxu0 0
    %207 = vmatpush1.bf16.msra.mxu0 0
    %208 = vmatprep.subr.bf16.mxu0 0
    %209 = vmatpush1.bf16.msra.mxu0 0
    %210 = vmatprep.subr.bf16.mxu0 0
    %211 = vmatpush1.bf16.msra.mxu0 0
    %212 = vmatprep.subr.bf16.mxu0 0
    %213 = vmatpush1.bf16.msra.mxu0 0
    %214 = vmatprep.subr.bf16.mxu0 0
    %215 = vmatpush1.bf16.msra.mxu0 0
    %216 = vmatprep.subr.bf16.mxu0 0
    %217 = vmatpush1.bf16.msra.mxu0 0
    %218 = vmatprep.subr.bf16.mxu0 0
    %219 = vmatpush1.bf16.msra.mxu0 0
    %220 = vmatprep.subr.bf16.mxu0 0
    %221 = vmatpush1.bf16.msra.mxu0 0
    %222 = vmatprep.subr.bf16.mxu0 0
    %223 = vmatpush1.bf16.msra.mxu0 0
    %224 = vmatprep.subr.bf16.mxu0 0
    %225 = vmatpush1.bf16.msra.mxu0 0
    %226 = vmatprep.subr.bf16.mxu0 0
    %227 = vmatpush1.bf16.msra.mxu0 0
    %228 = vmatprep.subr.bf16.mxu0 0
    %229 = vmatpush1.bf16.msra.mxu0 0
    %230 = vmatprep.subr.bf16.mxu0 0
    %231 = vmatpush1.bf16.msra.mxu0 0
    %232 = vmatprep.subr.bf16.mxu0 0
    %233 = vmatpush1.bf16.msra.mxu0 0
    %234 = vmatprep.mubr.bf16.mxu0 0
    %235 = vmatmul.mubr.bf16.gmra.mrb[0].mxu0 %v200
    %v236 = vpop.f32.mrb[0].mxu0
    %v237 = vadd.f32 0.0, %v236
    %v238 = vpop.f32.mrb[0].mxu0
    %v239 = vpop.f32.mrb[0].mxu0
    %v240 = vpop.f32.mrb[0].mxu0
    %241 = vdwg.mxu0
    %v242 = vadd.f32 %v194, %v237
    %v243 = vxor.u32 %v242, 2147483648
    %v244 = vmul.f32 %v243, 1.442695
    %v245 = vpow.pop %v244
    %v246 = vadd.f32 %v245, 1.0
    %v247 = vrcp.pop %v246
    %v248 = vmul.f32 1.0, %v247
    %v249 = vtanh.pop %v242
    %v250 = vmul.f32 %v248, %v186
    %252 = vrot.lane.b32.xlu0 %v249, 64
    %v253 = vpop.permute.xlu0 %252
    %v255 = vmul.f32 %v248, %v253
    %257 = vrot.lane.b32.xlu0 %v255, 32
    %v258 = vpop.permute.xlu0 %257
    %v260 = vadd.f32 %v250, %v258
    %v261 = vtanh.pop %v260
    %263 = vrot.lane.b32.xlu0 %v261, 64
    %v264 = vpop.permute.xlu0 %263
    %v266 = vmul.f32 %v248, %v264
    %s267 = scalar_lea.vmem %s0, 6
    %v268 = vld [vmem:[%s267] sm:$0x3]
    %v269 = vpack.c.bf16 %v266, %v266
    %271 = vrot.lane.b32.xlu0 %v269, 32
    %v272 = vpop.permute.xlu0 %271
    %v274 = vsel %vm46, %v272, 0
    %276 = vmatprep.subr.bf16.mxu0 0
    %277 = vmatpush1.bf16.msra.mxu0 %v42
    %278 = vmatprep.subr.bf16.mxu0 0
    %279 = vmatpush1.bf16.msra.mxu0 %v43
    %280 = vmatprep.subr.bf16.mxu0 0
    %281 = vmatpush1.bf16.msra.mxu0 0
    %282 = vmatprep.subr.bf16.mxu0 0
    %283 = vmatpush1.bf16.msra.mxu0 0
    %284 = vmatprep.subr.bf16.mxu0 0
    %285 = vmatpush1.bf16.msra.mxu0 0
    %286 = vmatprep.subr.bf16.mxu0 0
    %287 = vmatpush1.bf16.msra.mxu0 0
    %288 = vmatprep.subr.bf16.mxu0 0
    %289 = vmatpush1.bf16.msra.mxu0 0
    %290 = vmatprep.subr.bf16.mxu0 0
    %291 = vmatpush1.bf16.msra.mxu0 0
    %292 = vmatprep.subr.bf16.mxu0 0
    %293 = vmatpush1.bf16.msra.mxu0 0
    %294 = vmatprep.subr.bf16.mxu0 0
    %295 = vmatpush1.bf16.msra.mxu0 0
    %296 = vmatprep.subr.bf16.mxu0 0
    %297 = vmatpush1.bf16.msra.mxu0 0
    %298 = vmatprep.subr.bf16.mxu0 0
    %299 = vmatpush1.bf16.msra.mxu0 0
    %300 = vmatprep.subr.bf16.mxu0 0
    %301 = vmatpush1.bf16.msra.mxu0 0
    %302 = vmatprep.subr.bf16.mxu0 0
    %303 = vmatpush1.bf16.msra.mxu0 0
    %304 = vmatprep.subr.bf16.mxu0 0
    %305 = vmatpush1.bf16.msra.mxu0 0
    %306 = vmatprep.subr.bf16.mxu0 0
    %307 = vmatpush1.bf16.msra.mxu0 0
    %308 = vmatprep.mubr.bf16.mxu0 0
    %309 = vmatmul.mubr.bf16.gmra.mrb[0].mxu0 %v274
    %v310 = vpop.f32.mrb[0].mxu0
    %v311 = vadd.f32 0.0, %v310
    %v312 = vpop.f32.mrb[0].mxu0
    %v313 = vpop.f32.mrb[0].mxu0
    %v314 = vpop.f32.mrb[0].mxu0
    %315 = vdwg.mxu0
    %v316 = vadd.f32 %v268, %v311
    %v317 = vxor.u32 %v316, 2147483648
    %v318 = vmul.f32 %v317, 1.442695
    %v319 = vpow.pop %v318
    %v320 = vadd.f32 %v319, 1.0
    %v321 = vrcp.pop %v320
    %v322 = vmul.f32 1.0, %v321
    %v323 = vtanh.pop %v316
    %v324 = vmul.f32 %v322, %v260
    %326 = vrot.lane.b32.xlu0 %v323, 64
    %v327 = vpop.permute.xlu0 %326
    %v329 = vmul.f32 %v322, %v327
    %331 = vrot.lane.b32.xlu0 %v329, 32
    %v332 = vpop.permute.xlu0 %331
    %v334 = vadd.f32 %v324, %v332
    %v335 = vtanh.pop %v334
    %337 = vrot.lane.b32.xlu0 %v335, 64
    %v338 = vpop.permute.xlu0 %337
    %v340 = vmul.f32 %v322, %v338
    %s341 = scalar_lea.vmem %s0, 8
    %v342 = vld [vmem:[%s341] sm:$0x3]
    %v343 = vpack.c.bf16 %v340, %v340
    %345 = vrot.lane.b32.xlu0 %v343, 32
    %v346 = vpop.permute.xlu0 %345
    %v348 = vsel %vm46, %v346, 0
    %350 = vmatprep.subr.bf16.mxu0 0
    %351 = vmatpush1.bf16.msra.mxu0 %v42
    %352 = vmatprep.subr.bf16.mxu0 0
    %353 = vmatpush1.bf16.msra.mxu0 %v43
    %354 = vmatprep.subr.bf16.mxu0 0
    %355 = vmatpush1.bf16.msra.mxu0 0
    %356 = vmatprep.subr.bf16.mxu0 0
    %357 = vmatpush1.bf16.msra.mxu0 0
    %358 = vmatprep.subr.bf16.mxu0 0
    %359 = vmatpush1.bf16.msra.mxu0 0
    %360 = vmatprep.subr.bf16.mxu0 0
    %361 = vmatpush1.bf16.msra.mxu0 0
    %362 = vmatprep.subr.bf16.mxu0 0
    %363 = vmatpush1.bf16.msra.mxu0 0
    %364 = vmatprep.subr.bf16.mxu0 0
    %365 = vmatpush1.bf16.msra.mxu0 0
    %366 = vmatprep.subr.bf16.mxu0 0
    %367 = vmatpush1.bf16.msra.mxu0 0
    %368 = vmatprep.subr.bf16.mxu0 0
    %369 = vmatpush1.bf16.msra.mxu0 0
    %370 = vmatprep.subr.bf16.mxu0 0
    %371 = vmatpush1.bf16.msra.mxu0 0
    %372 = vmatprep.subr.bf16.mxu0 0
    %373 = vmatpush1.bf16.msra.mxu0 0
    %374 = vmatprep.subr.bf16.mxu0 0
    %375 = vmatpush1.bf16.msra.mxu0 0
    %376 = vmatprep.subr.bf16.mxu0 0
    %377 = vmatpush1.bf16.msra.mxu0 0
    %378 = vmatprep.subr.bf16.mxu0 0
    %379 = vmatpush1.bf16.msra.mxu0 0
    %380 = vmatprep.subr.bf16.mxu0 0
    %381 = vmatpush1.bf16.msra.mxu0 0
    %382 = vmatprep.mubr.bf16.mxu0 0
    %383 = vmatmul.mubr.bf16.gmra.mrb[0].mxu0 %v348
    %v384 = vpop.f32.mrb[0].mxu0
    %v385 = vadd.f32 0.0, %v384
    %v386 = vpop.f32.mrb[0].mxu0
    %v387 = vpop.f32.mrb[0].mxu0
    %v388 = vpop.f32.mrb[0].mxu0
    %389 = vdwg.mxu0
    %v390 = vadd.f32 %v342, %v385
    %v391 = vxor.u32 %v390, 2147483648
    %v392 = vmul.f32 %v391, 1.442695
    %v393 = vpow.pop %v392
    %v394 = vadd.f32 %v393, 1.0
    %v395 = vrcp.pop %v394
    %v396 = vmul.f32 1.0, %v395
    %v397 = vtanh.pop %v390
    %v398 = vmul.f32 %v396, %v334
    %400 = vrot.lane.b32.xlu0 %v397, 64
    %v401 = vpop.permute.xlu0 %400
    %v403 = vmul.f32 %v396, %v401
    %405 = vrot.lane.b32.xlu0 %v403, 32
    %v406 = vpop.permute.xlu0 %405
    %v408 = vadd.f32 %v398, %v406
    %v409 = vtanh.pop %v408
    %411 = vrot.lane.b32.xlu0 %v409, 64
    %v412 = vpop.permute.xlu0 %411
    %v414 = vmul.f32 %v396, %v412
    %s415 = scalar_lea.vmem %s0, 10
    %v416 = vld [vmem:[%s415] sm:$0x3]
    %v417 = vpack.c.bf16 %v414, %v414
    %419 = vrot.lane.b32.xlu0 %v417, 32
    %v420 = vpop.permute.xlu0 %419
    %v422 = vsel %vm46, %v420, 0
    %424 = vmatprep.subr.bf16.mxu0 0
    %425 = vmatpush1.bf16.msra.mxu0 %v42
    %426 = vmatprep.subr.bf16.mxu0 0
    %427 = vmatpush1.bf16.msra.mxu0 %v43
    %428 = vmatprep.subr.bf16.mxu0 0
    %429 = vmatpush1.bf16.msra.mxu0 0
    %430 = vmatprep.subr.bf16.mxu0 0
    %431 = vmatpush1.bf16.msra.mxu0 0
    %432 = vmatprep.subr.bf16.mxu0 0
    %433 = vmatpush1.bf16.msra.mxu0 0
    %434 = vmatprep.subr.bf16.mxu0 0
    %435 = vmatpush1.bf16.msra.mxu0 0
    %436 = vmatprep.subr.bf16.mxu0 0
    %437 = vmatpush1.bf16.msra.mxu0 0
    %438 = vmatprep.subr.bf16.mxu0 0
    %439 = vmatpush1.bf16.msra.mxu0 0
    %440 = vmatprep.subr.bf16.mxu0 0
    %441 = vmatpush1.bf16.msra.mxu0 0
    %442 = vmatprep.subr.bf16.mxu0 0
    %443 = vmatpush1.bf16.msra.mxu0 0
    %444 = vmatprep.subr.bf16.mxu0 0
    %445 = vmatpush1.bf16.msra.mxu0 0
    %446 = vmatprep.subr.bf16.mxu0 0
    %447 = vmatpush1.bf16.msra.mxu0 0
    %448 = vmatprep.subr.bf16.mxu0 0
    %449 = vmatpush1.bf16.msra.mxu0 0
    %450 = vmatprep.subr.bf16.mxu0 0
    %451 = vmatpush1.bf16.msra.mxu0 0
    %452 = vmatprep.subr.bf16.mxu0 0
    %453 = vmatpush1.bf16.msra.mxu0 0
    %454 = vmatprep.subr.bf16.mxu0 0
    %455 = vmatpush1.bf16.msra.mxu0 0
    %456 = vmatprep.mubr.bf16.mxu0 0
    %457 = vmatmul.mubr.bf16.gmra.mrb[0].mxu0 %v422
    %v458 = vpop.f32.mrb[0].mxu0
    %v459 = vadd.f32 0.0, %v458
    %v460 = vpop.f32.mrb[0].mxu0
    %v461 = vpop.f32.mrb[0].mxu0
    %v462 = vpop.f32.mrb[0].mxu0
    %463 = vdwg.mxu0
    %v464 = vadd.f32 %v416, %v459
    %v465 = vxor.u32 %v464, 2147483648
    %v466 = vmul.f32 %v465, 1.442695
    %v467 = vpow.pop %v466
    %v468 = vadd.f32 %v467, 1.0
    %v469 = vrcp.pop %v468
    %v470 = vmul.f32 1.0, %v469
    %v471 = vtanh.pop %v464
    %v472 = vmul.f32 %v470, %v408
    %474 = vrot.lane.b32.xlu0 %v471, 64
    %v475 = vpop.permute.xlu0 %474
    %v477 = vmul.f32 %v470, %v475
    %479 = vrot.lane.b32.xlu0 %v477, 32
    %v480 = vpop.permute.xlu0 %479
    %v482 = vadd.f32 %v472, %v480
    %v483 = vtanh.pop %v482
    %485 = vrot.lane.b32.xlu0 %v483, 64
    %v486 = vpop.permute.xlu0 %485
    %v488 = vmul.f32 %v470, %v486
    %s489 = scalar_lea.vmem %s0, 12
    %v490 = vld [vmem:[%s489] sm:$0x3]
    %v491 = vpack.c.bf16 %v488, %v488
    %493 = vrot.lane.b32.xlu0 %v491, 32
    %v494 = vpop.permute.xlu0 %493
    %v496 = vsel %vm46, %v494, 0
    %498 = vmatprep.subr.bf16.mxu0 0
    %499 = vmatpush1.bf16.msra.mxu0 %v42
    %500 = vmatprep.subr.bf16.mxu0 0
    %501 = vmatpush1.bf16.msra.mxu0 %v43
    %502 = vmatprep.subr.bf16.mxu0 0
    %503 = vmatpush1.bf16.msra.mxu0 0
    %504 = vmatprep.subr.bf16.mxu0 0
    %505 = vmatpush1.bf16.msra.mxu0 0
    %506 = vmatprep.subr.bf16.mxu0 0
    %507 = vmatpush1.bf16.msra.mxu0 0
    %508 = vmatprep.subr.bf16.mxu0 0
    %509 = vmatpush1.bf16.msra.mxu0 0
    %510 = vmatprep.subr.bf16.mxu0 0
    %511 = vmatpush1.bf16.msra.mxu0 0
    %512 = vmatprep.subr.bf16.mxu0 0
    %513 = vmatpush1.bf16.msra.mxu0 0
    %514 = vmatprep.subr.bf16.mxu0 0
    %515 = vmatpush1.bf16.msra.mxu0 0
    %516 = vmatprep.subr.bf16.mxu0 0
    %517 = vmatpush1.bf16.msra.mxu0 0
    %518 = vmatprep.subr.bf16.mxu0 0
    %519 = vmatpush1.bf16.msra.mxu0 0
    %520 = vmatprep.subr.bf16.mxu0 0
    %521 = vmatpush1.bf16.msra.mxu0 0
    %522 = vmatprep.subr.bf16.mxu0 0
    %523 = vmatpush1.bf16.msra.mxu0 0
    %524 = vmatprep.subr.bf16.mxu0 0
    %525 = vmatpush1.bf16.msra.mxu0 0
    %526 = vmatprep.subr.bf16.mxu0 0
    %527 = vmatpush1.bf16.msra.mxu0 0
    %528 = vmatprep.subr.bf16.mxu0 0
    %529 = vmatpush1.bf16.msra.mxu0 0
    %530 = vmatprep.mubr.bf16.mxu0 0
    %531 = vmatmul.mubr.bf16.gmra.mrb[0].mxu0 %v496
    %v532 = vpop.f32.mrb[0].mxu0
    %v533 = vadd.f32 0.0, %v532
    %v534 = vpop.f32.mrb[0].mxu0
    %v535 = vpop.f32.mrb[0].mxu0
    %v536 = vpop.f32.mrb[0].mxu0
    %537 = vdwg.mxu0
    %v538 = vadd.f32 %v490, %v533
    %v539 = vxor.u32 %v538, 2147483648
    %v540 = vmul.f32 %v539, 1.442695
    %v541 = vpow.pop %v540
    %v542 = vadd.f32 %v541, 1.0
    %v543 = vrcp.pop %v542
    %v544 = vmul.f32 1.0, %v543
    %v545 = vtanh.pop %v538
    %v546 = vmul.f32 %v544, %v482
    %548 = vrot.lane.b32.xlu0 %v545, 64
    %v549 = vpop.permute.xlu0 %548
    %v551 = vmul.f32 %v544, %v549
    %553 = vrot.lane.b32.xlu0 %v551, 32
    %v554 = vpop.permute.xlu0 %553
    %v556 = vadd.f32 %v546, %v554
    %v557 = vtanh.pop %v556
    %559 = vrot.lane.b32.xlu0 %v557, 64
    %v560 = vpop.permute.xlu0 %559
    %v562 = vmul.f32 %v544, %v560
    %s563 = scalar_lea.vmem %s0, 14
    %v564 = vld [vmem:[%s563] sm:$0x3]
    %v565 = vpack.c.bf16 %v562, %v562
    %567 = vrot.lane.b32.xlu0 %v565, 32
    %v568 = vpop.permute.xlu0 %567
    %v570 = vsel %vm46, %v568, 0
    %572 = vmatprep.subr.bf16.mxu0 0
    %573 = vmatpush1.bf16.msra.mxu0 %v42
    %574 = vmatprep.subr.bf16.mxu0 0
    %575 = vmatpush1.bf16.msra.mxu0 %v43
    %576 = vmatprep.subr.bf16.mxu0 0
    %577 = vmatpush1.bf16.msra.mxu0 0
    %578 = vmatprep.subr.bf16.mxu0 0
    %579 = vmatpush1.bf16.msra.mxu0 0
    %580 = vmatprep.subr.bf16.mxu0 0
    %581 = vmatpush1.bf16.msra.mxu0 0
    %582 = vmatprep.subr.bf16.mxu0 0
    %583 = vmatpush1.bf16.msra.mxu0 0
    %584 = vmatprep.subr.bf16.mxu0 0
    %585 = vmatpush1.bf16.msra.mxu0 0
    %586 = vmatprep.subr.bf16.mxu0 0
    %587 = vmatpush1.bf16.msra.mxu0 0
    %588 = vmatprep.subr.bf16.mxu0 0
    %589 = vmatpush1.bf16.msra.mxu0 0
    %590 = vmatprep.subr.bf16.mxu0 0
    %591 = vmatpush1.bf16.msra.mxu0 0
    %592 = vmatprep.subr.bf16.mxu0 0
    %593 = vmatpush1.bf16.msra.mxu0 0
    %594 = vmatprep.subr.bf16.mxu0 0
    %595 = vmatpush1.bf16.msra.mxu0 0
    %596 = vmatprep.subr.bf16.mxu0 0
    %597 = vmatpush1.bf16.msra.mxu0 0
    %598 = vmatprep.subr.bf16.mxu0 0
    %599 = vmatpush1.bf16.msra.mxu0 0
    %600 = vmatprep.subr.bf16.mxu0 0
    %601 = vmatpush1.bf16.msra.mxu0 0
    %602 = vmatprep.subr.bf16.mxu0 0
    %603 = vmatpush1.bf16.msra.mxu0 0
    %604 = vmatprep.mubr.bf16.mxu0 0
    %605 = vmatmul.mubr.bf16.gmra.mrb[0].mxu0 %v570
    %v606 = vpop.f32.mrb[0].mxu0
    %v607 = vadd.f32 0.0, %v606
    %v608 = vpop.f32.mrb[0].mxu0
    %v609 = vpop.f32.mrb[0].mxu0
    %v610 = vpop.f32.mrb[0].mxu0
    %611 = vdwg.mxu0
    %v612 = vadd.f32 %v564, %v607
    %v613 = vxor.u32 %v612, 2147483648
    %v614 = vmul.f32 %v613, 1.442695
    %v615 = vpow.pop %v614
    %v616 = vadd.f32 %v615, 1.0
    %v617 = vrcp.pop %v616
    %v618 = vmul.f32 1.0, %v617
    %v619 = vtanh.pop %v612
    %v620 = vmul.f32 %v618, %v556
    %622 = vrot.lane.b32.xlu0 %v619, 64
    %v623 = vpop.permute.xlu0 %622
    %v625 = vmul.f32 %v618, %v623
    %627 = vrot.lane.b32.xlu0 %v625, 32
    %v628 = vpop.permute.xlu0 %627
    %v630 = vadd.f32 %v620, %v628
    %v631 = vtanh.pop %v630
    %633 = vrot.lane.b32.xlu0 %v631, 64
    %v634 = vpop.permute.xlu0 %633
    %v636 = vmul.f32 %v618, %v634
    %638 = vrot.lane.b32.xlu0 %v636, 32
    %v639 = vpop.permute.xlu0 %638
    %vm641 = vcmask 254976
    %642 = vst.msk [vmem:[#allocation2] sm:$0x3] %vm641, %v639
    %644 = vrot.lane.b32.xlu0 %v630, 96
    %v645 = vpop.permute.xlu0 %644
    %647 = vst.msk [vmem:[#allocation3] sm:$0x3] %vm641, %v645
    // Predicated region
    $region22: #{lstm_norm_forward.7} parent=1 // pred_check
      %p648 = pneg %p19
    $region23: #{lstm_norm_forward.7} parent=1 // pred_check_branch
      %650 = sbr.rel (%p648) target = $region25
    $region24: #{lstm_norm_forward.7} parent=1 // pred_region
      %v651 = vld [vmem:[%s2] sm:$0xff]
      %v652 = vld [vmem:[%s2 + $0x8] sm:$0xff]
      %v653 = vld [vmem:[%s2 + $0x10] sm:$0xff]
      %v654 = vld [vmem:[%s2 + $0x18] sm:$0xff]
      %v655 = vld [vmem:[%s3] sm:$0x1]
      %v657 = vlaneseq
      %v658 = vshrl.u32 %v657, 7
      %v659 = vsub.s32 0, %v658
      %v660 = vrot.slane %v655, %v659
      %v662 = vsel %vm46, %v639, 0
      %664 = vmatprep.subr.mxu0 0.0
      %665 = vmatpush1.msra.mxu0 %v651
      %666 = vmatprep.subr.mxu0 0.0
      %667 = vmatpush1.msra.mxu0 %v652
      %668 = vmatprep.subr.mxu0 0.0
      %669 = vmatpush1.msra.mxu0 %v653
      %670 = vmatprep.subr.mxu0 0.0
      %671 = vmatpush1.msra.mxu0 %v654
      %672 = vmatprep.subr.mxu0 0.0
      %673 = vmatpush1.msra.mxu0 0.0
      %674 = vmatprep.subr.mxu0 0.0
      %675 = vmatpush1.msra.mxu0 0.0
      %676 = vmatprep.subr.mxu0 0.0
      %677 = vmatpush1.msra.mxu0 0.0
      %678 = vmatprep.subr.mxu0 0.0
      %679 = vmatpush1.msra.mxu0 0.0
      %680 = vmatprep.subr.mxu0 0.0
      %681 = vmatpush1.msra.mxu0 0.0
      %682 = vmatprep.subr.mxu0 0.0
      %683 = vmatpush1.msra.mxu0 0.0
      %684 = vmatprep.subr.mxu0 0.0
      %685 = vmatpush1.msra.mxu0 0.0
      %686 = vmatprep.subr.mxu0 0.0
      %687 = vmatpush1.msra.mxu0 0.0
      %688 = vmatprep.subr.mxu0 0.0
      %689 = vmatpush1.msra.mxu0 0.0
      %690 = vmatprep.subr.mxu0 0.0
      %691 = vmatpush1.msra.mxu0 0.0
      %692 = vmatprep.subr.mxu0 0.0
      %693 = vmatpush1.msra.mxu0 0.0
      %694 = vmatprep.subr.mxu0 0.0
      %695 = vmatpush1.msra.mxu0 0.0
      %696 = vmatprep.subr.mxu0 0.0
      %697 = vmatpush1.msra.mxu0 0.0
      %698 = vmatprep.subr.mxu0 0.0
      %699 = vmatpush1.msra.mxu0 0.0
      %700 = vmatprep.subr.mxu0 0.0
      %701 = vmatpush1.msra.mxu0 0.0
      %702 = vmatprep.subr.mxu0 0.0
      %703 = vmatpush1.msra.mxu0 0.0
      %704 = vmatprep.subr.mxu0 0.0
      %705 = vmatpush1.msra.mxu0 0.0
      %706 = vmatprep.subr.mxu0 0.0
      %707 = vmatpush1.msra.mxu0 0.0
      %708 = vmatprep.subr.mxu0 0.0
      %709 = vmatpush1.msra.mxu0 0.0
      %710 = vmatprep.subr.mxu0 0.0
      %711 = vmatpush1.msra.mxu0 0.0
      %712 = vmatprep.subr.mxu0 0.0
      %713 = vmatpush1.msra.mxu0 0.0
      %714 = vmatprep.subr.mxu0 0.0
      %715 = vmatpush1.msra.mxu0 0.0
      %716 = vmatprep.subr.mxu0 0.0
      %717 = vmatpush1.msra.mxu0 0.0
      %718 = vmatprep.subr.mxu0 0.0
      %719 = vmatpush1.msra.mxu0 0.0
      %720 = vmatprep.subr.mxu0 0.0
      %721 = vmatpush1.msra.mxu0 0.0
      %722 = vmatprep.subr.mxu0 0.0
      %723 = vmatpush1.msra.mxu0 0.0
      %724 = vmatprep.subr.mxu0 0.0
      %725 = vmatpush1.msra.mxu0 0.0
      %726 = vmatprep.subr.mxu0 0.0
      %727 = vmatpush1.msra.mxu0 0.0
      %728 = vmatprep.mubr.f32.mxu0 0.0
      %729 = vmatmul.mubr.f32.gmra.mrb[0].mxu0 %v662
      %v730 = vpop.f32.mrb[0].mxu0
      %v731 = vadd.f32 %v660, %v730
      %v732 = vpop.f32.mrb[0].mxu0
      %733 = vdwg.mxu0
      %vm734 = vcmask 25600
      %735 = vst.msk [vmem:[#allocation4] sm:$0x3] %vm734, %v731
    $region25: #{lstm_norm_forward.7} parent=1 // pred_fallthru
      _
    // Predicated region
    $region26: #{lstm_norm_forward.7} parent=1 // pred_check
      _
    $region27: #{lstm_norm_forward.7} parent=1 // pred_check_branch
      %737 = sbr.rel (0) target = $region29
    $region28: #{lstm_norm_forward.7} parent=1 // pred_region
      %s739 = ssub.s32 32, 32
      %740 = vsyncadd [#allocation5], %s739
      %s742 = sshll.u32 [#allocation4], 4
      %s743 = int_to_ptr.vmem [resolvable:$true] %s742
      %745 = dma.vmem_to_hbm [thread:$0]  %s743, 32, %s4, [#allocation5]
    $region29: #{lstm_norm_forward.7} parent=1 // pred_fallthru
      _
    // Predicated region
    $region30: #{lstm_norm_forward.7} parent=1 // pred_check
      _
    $region31: #{lstm_norm_forward.7} parent=1 // pred_check_branch
      %747 = sbr.rel (0) target = $region33
    $region32: #{lstm_norm_forward.7} parent=1 // pred_region
      %748 = dma.done [#allocation5], 32
    $region33: #{lstm_norm_forward.7} parent=1 // pred_fallthru
      _
    %749 = vsyncpa [#allocation5], 1

</llo_original>
